<compile_context>
chip_gen: v5e
topology: v5e:2x2
jax: 0.10.0
libtpu: 0.0.40
codegen_flags: <defaults>
</compile_context>

<pallas_src>
import functools

import jax
import jax.numpy as jnp
from jax import lax
from jax.experimental import pallas as pl
from jax.experimental.pallas import tpu as pltpu

LN_EPS = 1e-5


# ---------------------------------------------------------------------------
# Pallas kernels
# ---------------------------------------------------------------------------
def _attn_block_kernel(*refs, inv_scale, return_attn):
    """Fused attention sub-layer for one batch element:
       per-head QKV projections -> masked softmax attention (batched over heads)
       -> output projection -> residual add -> LayerNorm.  Optionally emits attn weights."""
    if return_attn:
        (x_ref, kv_ref, mask_ref,
         wq_ref, bq_ref, wk_ref, bk_ref, wv_ref, bv_ref,
         wo_ref, bo_ref, g_ref, beta_ref, o_ref, attn_ref) = refs
    else:
        (x_ref, kv_ref, mask_ref,
         wq_ref, bq_ref, wk_ref, bk_ref, wv_ref, bv_ref,
         wo_ref, bo_ref, g_ref, beta_ref, o_ref) = refs
        attn_ref = None

    nh = wq_ref.shape[0]
    x = x_ref[0]                      # (Lq, H) f32 -- residual / LN input
    src = kv_ref[0]                   # (Lk, H) f32
    Lq, H = x.shape
    Lk = src.shape[0]

    wdt = wq_ref.dtype                # MXU operand dtype (f32 or bf16)
    xb = jnp.broadcast_to(x.astype(wdt)[None], (nh, Lq, H))
    sb = jnp.broadcast_to(src.astype(wdt)[None], (nh, Lk, H))

    # batched per-head projections: contract feature dim, batch over heads (leading dim)
    proj_dims = (((2,), (1,)), ((0,), (0,)))
    qh = lax.dot_general(xb, wq_ref[...], proj_dims,
                         preferred_element_type=jnp.float32) + bq_ref[...]   # (nh, Lq, hd)
    kh = lax.dot_general(sb, wk_ref[...], proj_dims,
                         preferred_element_type=jnp.float32) + bk_ref[...]   # (nh, Lk, hd)
    vh = lax.dot_general(sb, wv_ref[...], proj_dims,
                         preferred_element_type=jnp.float32) + bv_ref[...]   # (nh, Lk, hd)

    # energy[h,q,k] = qh[h,q,:] . kh[h,k,:] / sqrt(head_dim)   ('bqd,bkd->bqk')
    energy = lax.dot_general(qh, kh, (((2,), (2,)), ((0,), (0,))),
                             preferred_element_type=jnp.float32) * inv_scale
    m = mask_ref[0]                   # (1, Mq, Lk), Mq in {1, Lq}; broadcast in-kernel
    energy = jnp.where(m == 0.0, jnp.float32(-1e10), energy)

    energy = energy - jnp.max(energy, axis=-1, keepdims=True)
    p = jnp.exp(energy)
    attn = p * pl.reciprocal(jnp.sum(p, axis=-1, keepdims=True), approx=True)

    # ctx[h,q,d] = sum_k attn[h,q,k] * vh[h,k,d]               ('bqk,bkd->bqd')
    ctx = lax.dot_general(attn, vh, (((2,), (1,)), ((0,), (0,))),
                          preferred_element_type=jnp.float32)               # (nh, Lq, hd)

    # output projection: per-head slabs of W_o, summed over heads, + bias
    proj = lax.dot_general(ctx.astype(wo_ref.dtype), wo_ref[...],
                           (((2,), (1,)), ((0,), (0,))),
                           preferred_element_type=jnp.float32)              # (nh, Lq, H)
    y = x + jnp.sum(proj, axis=0) + bo_ref[...]

    mu = jnp.mean(y, axis=-1, keepdims=True)
    var = jnp.mean((y - mu) * (y - mu), axis=-1, keepdims=True)
    o_ref[0] = ((y - mu) * lax.rsqrt(var + LN_EPS) * g_ref[...] + beta_ref[...]
                ).astype(o_ref.dtype)

    if return_attn:
        attn_ref[0] = attn.astype(attn_ref.dtype)


def _ffn_ln_kernel(x_ref, w1_ref, b1_ref, w2_ref, b2_ref, g_ref, beta_ref, o_ref):
    # y = LayerNorm(x + relu(x @ W1t + b1) @ W2t + b2)
    x = x_ref[...]                                                # (tm, H) f32
    wdt = w1_ref.dtype
    h = jnp.dot(x.astype(wdt), w1_ref[...],
                preferred_element_type=jnp.float32) + b1_ref[...]
    h = jnp.maximum(h, 0.0)
    f = jnp.dot(h.astype(wdt), w2_ref[...],
                preferred_element_type=jnp.float32) + b2_ref[...]
    y = x + f
    mu = jnp.mean(y, axis=-1, keepdims=True)
    var = jnp.mean((y - mu) * (y - mu), axis=-1, keepdims=True)
    o_ref[...] = ((y - mu) * lax.rsqrt(var + LN_EPS) * g_ref[...] + beta_ref[...]
                  ).astype(o_ref.dtype)


def _linear_kernel(x_ref, wt_ref, b_ref, o_ref):
    x = x_ref[...]
    o_ref[...] = (jnp.dot(x.astype(wt_ref.dtype), wt_ref[...],
                          preferred_element_type=jnp.float32) + b_ref[...]
                  ).astype(o_ref.dtype)


# ---------------------------------------------------------------------------
# Pallas wrappers (glue)
# ---------------------------------------------------------------------------
_PARALLEL1 = pltpu.CompilerParams(dimension_semantics=("parallel",))


def _row_tile(m, target=256):
    # full-array block for small M, else 256-row tiles (remainder handled by Pallas)
    return m if m <= target else target


def linear(x2d, wt, b2d, *, tm=256):
    M, K = x2d.shape
    N = wt.shape[1]
    tm = _row_tile(M, tm)
    # TODO(synk): pad N (e.g. output_dim=50) to a multiple of 128 for lane-dense stores.
    return pl.pallas_call(
        _linear_kernel,
        out_shape=jax.ShapeDtypeStruct((M, N), jnp.float32),
        grid=(pl.cdiv(M, tm),),
        in_specs=[pl.BlockSpec((tm, K), lambda i: (i, 0)),
                  pl.BlockSpec((K, N), lambda i: (0, 0)),
                  pl.BlockSpec((1, N), lambda i: (0, 0))],
        out_specs=pl.BlockSpec((tm, N), lambda i: (i, 0)),
        compiler_params=_PARALLEL1,
    )(x2d, wt, b2d)


def ffn_add_ln(x2d, w1t, b1, w2t, b2, g, beta, *, tm=256):
    M, H = x2d.shape
    P = w1t.shape[1]
    tm = _row_tile(M, tm)
    return pl.pallas_call(
        _ffn_ln_kernel,
        out_shape=jax.ShapeDtypeStruct((M, H), jnp.float32),
        grid=(pl.cdiv(M, tm),),
        in_specs=[pl.BlockSpec((tm, H), lambda i: (i, 0)),
                  pl.BlockSpec((H, P), lambda i: (0, 0)),
                  pl.BlockSpec((1, P), lambda i: (0, 0)),
                  pl.BlockSpec((P, H), lambda i: (0, 0)),
                  pl.BlockSpec((1, H), lambda i: (0, 0)),
                  pl.BlockSpec((1, H), lambda i: (0, 0)),
                  pl.BlockSpec((1, H), lambda i: (0, 0))],
        out_specs=pl.BlockSpec((tm, H), lambda i: (i, 0)),
        compiler_params=_PARALLEL1,
    )(x2d, w1t, b1, w2t, b2, g, beta)


def attention_block(x, kv_src, mask, lp, pfx, ln, *, return_attn=False):
    """Fused (attention + residual + LayerNorm) sub-layer.  x is both query and residual source."""
    B, Lq, H = x.shape
    Lk = kv_src.shape[1]
    nh = lp[f"{pfx}_wq"].shape[0]
    hd = H // nh
    mask = mask.astype(jnp.float32)
    Mq = mask.shape[2]

    kern = functools.partial(_attn_block_kernel,
                             inv_scale=1.0 / float(hd) ** 0.5,
                             return_attn=return_attn)

    in_specs = [
        pl.BlockSpec((1, Lq, H), lambda b: (b, 0, 0)),        # x (query + residual)
        pl.BlockSpec((1, Lk, H), lambda b: (b, 0, 0)),        # key/value source
        pl.BlockSpec((1, 1, Mq, Lk), lambda b: (b, 0, 0, 0)),  # mask (un-broadcast)
        pl.BlockSpec((nh, H, hd), lambda b: (0, 0, 0)),       # Wq (per-head)
        pl.BlockSpec((nh, 1, hd), lambda b: (0, 0, 0)),       # bq
        pl.BlockSpec((nh, H, hd), lambda b: (0, 0, 0)),       # Wk
        pl.BlockSpec((nh, 1, hd), lambda b: (0, 0, 0)),       # bk
        pl.BlockSpec((nh, H, hd), lambda b: (0, 0, 0)),       # Wv
        pl.BlockSpec((nh, 1, hd), lambda b: (0, 0, 0)),       # bv
        pl.BlockSpec((nh, hd, H), lambda b: (0, 0, 0)),       # Wo (per-head slabs)
        pl.BlockSpec((1, H), lambda b: (0, 0)),               # bo
        pl.BlockSpec((1, H), lambda b: (0, 0)),               # LN gamma
        pl.BlockSpec((1, H), lambda b: (0, 0)),               # LN beta
    ]
    args = (x, kv_src, mask,
            lp[f"{pfx}_wq"], lp[f"{pfx}_bq"],
            lp[f"{pfx}_wk"], lp[f"{pfx}_bk"],
            lp[f"{pfx}_wv"], lp[f"{pfx}_bv"],
            lp[f"{pfx}_wo"], lp[f"{pfx}_bo"],
            lp[f"{ln}_g"], lp[f"{ln}_b"])

    if return_attn:
        out_shape = (jax.ShapeDtypeStruct((B, Lq, H), jnp.float32),
                     jax.ShapeDtypeStruct((B, nh, Lq, Lk), jnp.float32))
        out_specs = (pl.BlockSpec((1, Lq, H), lambda b: (b, 0, 0)),
                     pl.BlockSpec((1, nh, Lq, Lk), lambda b: (b, 0, 0, 0)))
    else:
        out_shape = jax.ShapeDtypeStruct((B, Lq, H), jnp.float32)
        out_specs = pl.BlockSpec((1, Lq, H), lambda b: (b, 0, 0))

    res = pl.pallas_call(
        kern,
        out_shape=out_shape,
        grid=(B,),
        in_specs=in_specs,
        out_specs=out_specs,
        compiler_params=_PARALLEL1,
    )(*args)

    if return_attn:
        out, attn = res
        return out, attn
    return res, None


def decoder_layer(x, enc_src, trg_mask, src_mask, lp, *, need_attn):
    B, Lt, H = x.shape
    # masked self-attention + residual + LN (attention weights discarded -> not computed)
    x, _ = attention_block(x, x, trg_mask, lp, "sa", "ln1", return_attn=False)
    # encoder (cross) attention + residual + LN
    x, attention = attention_block(x, enc_src, src_mask, lp, "ea", "ln2",
                                   return_attn=need_attn)
    # position-wise feed-forward + residual + LN (fused, row-tiled)
    x = ffn_add_ln(x.reshape(B * Lt, H),
                   lp["ff_w1t"], lp["ff_b1"], lp["ff_w2t"], lp["ff_b2"],
                   lp["ln3_g"], lp["ln3_b"]).reshape(B, Lt, H)
    return x, attention


def decoder_forward(trg_tokens, enc_src, trg_mask, src_mask, params):
    B, Lt = trg_tokens.shape
    H = params["tok_emb"].shape[1]
    scale = jnp.sqrt(jnp.float32(H))
    pos = jnp.arange(Lt)
    # embedding gather + scaled sum (glue); dropout is identity in eval mode
    x = params["tok_emb"][trg_tokens] * scale + params["pos_emb"][pos][None, :, :]
    attention = None
    n_layers = len(params["layers"])
    for li, lp in enumerate(params["layers"]):
        x, attn = decoder_layer(x, enc_src, trg_mask, src_mask, lp,
                                need_attn=(li == n_layers - 1))
        if attn is not None:
            attention = attn
    out = linear(x.reshape(B * Lt, H), params["fc_out_wt"], params["fc_out_b"])
    return out.reshape(B, Lt, -1), attention


# ---------------------------------------------------------------------------
# Parameters: deterministic init (PyTorch layout) + one-time kernel re-layout
# ---------------------------------------------------------------------------
def init_params(key, output_dim, hid_dim, n_layers, n_heads, pf_dim, max_length):
    keys = iter(jax.random.split(key, 8 + n_layers * 32))

    def nrm(shape, std=0.02):
        return jax.random.normal(next(keys), shape, jnp.float32) * std

    params = {
        "tok_emb": nrm((output_dim, hid_dim)),
        "pos_emb": nrm((max_length, hid_dim)),
        "fc_out_w": nrm((output_dim, hid_dim)),
        "fc_out_b": nrm((output_dim,), 0.01),
        "layers": [],
    }
    for _ in range(n_layers):
        lp = {}
        for pfx in ("sa", "ea"):
            for name in ("q", "k", "v", "o"):
                lp[f"{pfx}_w{name}"] = nrm((hid_dim, hid_dim))
                lp[f"{pfx}_b{name}"] = nrm((hid_dim,), 0.01)
        for i in (1, 2, 3):
            lp[f"ln{i}_g"] = jnp.ones((hid_dim,), jnp.float32)
            lp[f"ln{i}_b"] = jnp.zeros((hid_dim,), jnp.float32)
        lp["ff_w1"] = nrm((pf_dim, hid_dim))
        lp["ff_b1"] = nrm((pf_dim,), 0.01)
        lp["ff_w2"] = nrm((hid_dim, pf_dim))
        lp["ff_b2"] = nrm((hid_dim,), 0.01)
        params["layers"].append(lp)
    return params


def prepare_params(raw, n_heads, mxu_dtype=jnp.float32):
    """One-time re-layout of PyTorch-convention weights into kernel-ready form
    (no per-call transposes).  Weight matrices are cast to `mxu_dtype`; biases and
    LayerNorm params stay f32."""
    H = raw["tok_emb"].shape[1]
    hd = H // n_heads

    def per_head_in(w):   # W:[out,in]=(H,H) -> (nh, H_in, hd): x @ W.T split per head
        return w.T.reshape(H, n_heads, hd).transpose(1, 0, 2).astype(mxu_dtype)

    def per_head_out(w):  # W:[out,in]=(H,H) -> (nh, hd, H): row-slabs of W.T per head
        return w.T.reshape(n_heads, hd, H).astype(mxu_dtype)

    p = {
        "tok_emb": raw["tok_emb"],
        "pos_emb": raw["pos_emb"],
        "fc_out_wt": raw["fc_out_w"].T.astype(mxu_dtype),
        "fc_out_b": raw["fc_out_b"].reshape(1, -1),
        "layers": [],
    }
    for lr in raw["layers"]:
        lp = {}
        for pfx in ("sa", "ea"):
            lp[f"{pfx}_wq"] = per_head_in(lr[f"{pfx}_wq"])
            lp[f"{pfx}_bq"] = lr[f"{pfx}_bq"].reshape(n_heads, 1, hd)
            lp[f"{pfx}_wk"] = per_head_in(lr[f"{pfx}_wk"])
            lp[f"{pfx}_bk"] = lr[f"{pfx}_bk"].reshape(n_heads, 1, hd)
            lp[f"{pfx}_wv"] = per_head_in(lr[f"{pfx}_wv"])
            lp[f"{pfx}_bv"] = lr[f"{pfx}_bv"].reshape(n_heads, 1, hd)
            lp[f"{pfx}_wo"] = per_head_out(lr[f"{pfx}_wo"])
            lp[f"{pfx}_bo"] = lr[f"{pfx}_bo"].reshape(1, H)
        for i in (1, 2, 3):
            lp[f"ln{i}_g"] = lr[f"ln{i}_g"].reshape(1, H)
            lp[f"ln{i}_b"] = lr[f"ln{i}_b"].reshape(1, H)
        lp["ff_w1t"] = lr["ff_w1"].T.astype(mxu_dtype)
        lp["ff_b1"] = lr["ff_b1"].reshape(1, -1)
        lp["ff_w2t"] = lr["ff_w2"].T.astype(mxu_dtype)
        lp["ff_b2"] = lr["ff_b2"].reshape(1, H)
        p["layers"].append(lp)
    return p


# ---------------------------------------------------------------------------
# Pure-JAX reference (for correctness check)
# ---------------------------------------------------------------------------
def _ref_linear(x, w, b):
    return x @ w.T + b


def _ref_ln(x, g, b):
    mu = jnp.mean(x, axis=-1, keepdims=True)
    var = jnp.mean((x - mu) ** 2, axis=-1, keepdims=True)
    return (x - mu) / jnp.sqrt(var + LN_EPS) * g + b


def _ref_mha(q, k, v, mask, lp, pfx, n_heads):
    B, Lq, H = q.shape
    Lk = k.shape[1]
    hd = H // n_heads
    Q = _ref_linear(q, lp[pfx + "_wq"], lp[pfx + "_bq"]).reshape(B, Lq, n_heads, hd).transpose(0, 2, 1, 3)
    K = _ref_linear(k, lp[pfx + "_wk"], lp[pfx + "_bk"]).reshape(B, Lk, n_heads, hd).transpose(0, 2, 1, 3)
    V = _ref_linear(v, lp[pfx + "_wv"], lp[pfx + "_bv"]).reshape(B, Lk, n_heads, hd).transpose(0, 2, 1, 3)
    energy = jnp.einsum("bhqd,bhkd->bhqk", Q, K) / (float(hd) ** 0.5)
    energy = jnp.where(mask == 0, -1e10, energy)
    attn = jax.nn.softmax(energy, axis=-1)
    ctx = jnp.einsum("bhqk,bhkd->bhqd", attn, V).transpose(0, 2, 1, 3).reshape(B, Lq, H)
    return _ref_linear(ctx, lp[pfx + "_wo"], lp[pfx + "_bo"]), attn


def ref_decoder(trg_tokens, enc_src, trg_mask, src_mask, params, n_heads):
    H = params["tok_emb"].shape[1]
    Lt = trg_tokens.shape[1]
    x = params["tok_emb"][trg_tokens] * jnp.sqrt(jnp.float32(H)) + params["pos_emb"][jnp.arange(Lt)][None]
    attention = None
    for lp in params["layers"]:
        sa, _ = _ref_mha(x, x, x, trg_mask, lp, "sa", n_heads)
        x = _ref_ln(x + sa, lp["ln1_g"], lp["ln1_b"])
        ea, attention = _ref_mha(x, enc_src, enc_src, src_mask, lp, "ea", n_heads)
        x = _ref_ln(x + ea, lp["ln2_g"], lp["ln2_b"])
        f = _ref_linear(jnp.maximum(_ref_linear(x, lp["ff_w1"], lp["ff_b1"]), 0.0), lp["ff_w2"], lp["ff_b2"])
        x = _ref_ln(x + f, lp["ln3_g"], lp["ln3_b"])
    return _ref_linear(x, params["fc_out_w"], params["fc_out_b"]), attention


# ---------------------------------------------------------------------------
if __name__ == "__main__":
    B, trg_len, src_len = 2, 8, 8
    hid_dim, n_heads, pf_dim, n_layers = 32, 4, 64, 2
    output_dim = 50
    max_length = 64  # small synthetic positional table (module default 10000)

    key = jax.random.PRNGKey(0)
    kp, kt, ke = jax.random.split(key, 3)

    raw = init_params(kp, output_dim, hid_dim, n_layers, n_heads, pf_dim, max_length)

    trg = jax.random.randint(kt, (B, trg_len), 0, output_dim)            # [batch, trg_len]
    enc_src = jax.random.normal(ke, (B, src_len, hid_dim), jnp.float32)  # [batch, src_len, hid]

    # target mask: causal (lower-triangular), [B, 1, trg_len, trg_len]
    trg_mask = jnp.broadcast_to(
        jnp.tril(jnp.ones((trg_len, trg_len), jnp.float32)), (B, 1, trg_len, trg_len)
    )
    # source mask: pad mask, [B, 1, 1, src_len] (batch 1 has 2 trailing pads)
    src_pad = jnp.ones((B, src_len), jnp.float32).at[1, src_len - 2:].set(0.0)
    src_mask = src_pad[:, None, None, :]

    ref_out, ref_attn = ref_decoder(trg, enc_src, trg_mask, src_mask, raw, n_heads)

    # ---- f32 MXU-operand path (tight check; approx reciprocal in softmax) ----
    params_f32 = prepare_params(raw, n_heads, mxu_dtype=jnp.float32)
    out, attn = decoder_forward(trg, enc_src, trg_mask, src_mask, params_f32)
    out, attn = jax.block_until_ready((out, attn))
    assert out.shape == (B, trg_len, output_dim)
    assert attn.shape == (B, n_heads, trg_len, src_len)
    assert jnp.allclose(out, ref_out, atol=3e-3, rtol=3e-3), "output mismatch (f32)"
    assert jnp.allclose(attn, ref_attn, atol=3e-3, rtol=3e-3), "attention mismatch (f32)"

    # ---- bf16 MXU-operand path (v6e/v7x fast path); softmax/LN stats remain f32 ----
    params_bf16 = prepare_params(raw, n_heads, mxu_dtype=jnp.bfloat16)
    out16, attn16 = jax.block_until_ready(
        decoder_forward(trg, enc_src, trg_mask, src_mask, params_bf16))
    assert jnp.allclose(out16, ref_out, atol=5e-2, rtol=5e-2), "output mismatch (bf16)"
    assert jnp.allclose(attn16, ref_attn, atol=5e-2, rtol=5e-2), "attention mismatch (bf16)"

    print("KERNEL_OK")
</pallas_src>

<mosaic_0001>
module attributes {stable_mosaic.version = 11 : i64} {
  func.func @_attn_block_kernel(%arg0: i32, %arg1: memref<1x8x32xf32, #tpu.memory_space<vmem>>, %arg2: memref<1x8x32xf32, #tpu.memory_space<vmem>>, %arg3: memref<1x1x8x8xf32, #tpu.memory_space<vmem>>, %arg4: memref<4x32x8xf32, #tpu.memory_space<vmem>>, %arg5: memref<4x1x8xf32, #tpu.memory_space<vmem>>, %arg6: memref<4x32x8xf32, #tpu.memory_space<vmem>>, %arg7: memref<4x1x8xf32, #tpu.memory_space<vmem>>, %arg8: memref<4x32x8xf32, #tpu.memory_space<vmem>>, %arg9: memref<4x1x8xf32, #tpu.memory_space<vmem>>, %arg10: memref<4x8x32xf32, #tpu.memory_space<vmem>>, %arg11: memref<1x32xf32, #tpu.memory_space<vmem>>, %arg12: memref<1x32xf32, #tpu.memory_space<vmem>>, %arg13: memref<1x32xf32, #tpu.memory_space<vmem>>, %arg14: memref<1x8x32xf32, #tpu.memory_space<vmem>>) attributes {dimension_semantics = [#tpu.dimension_semantics<parallel>], iteration_bounds = array<i64: 2>, scalar_prefetch = 0 : i64, scratch_operands = 0 : i64, tpu.core_type = #tpu.core_type<tc>, window_params = [{transform_indices = @transform_0, window_bounds = array<i64: 1, 8, 32>}, {transform_indices = @transform_1, window_bounds = array<i64: 1, 8, 32>}, {transform_indices = @transform_2, window_bounds = array<i64: 1, 1, 8, 8>}, {pipeline_mode = #tpu.pipeline_mode<synchronous>, transform_indices = @transform_3, window_bounds = array<i64: 4, 32, 8>}, {pipeline_mode = #tpu.pipeline_mode<synchronous>, transform_indices = @transform_4, window_bounds = array<i64: 4, 1, 8>}, {pipeline_mode = #tpu.pipeline_mode<synchronous>, transform_indices = @transform_5, window_bounds = array<i64: 4, 32, 8>}, {pipeline_mode = #tpu.pipeline_mode<synchronous>, transform_indices = @transform_6, window_bounds = array<i64: 4, 1, 8>}, {pipeline_mode = #tpu.pipeline_mode<synchronous>, transform_indices = @transform_7, window_bounds = array<i64: 4, 32, 8>}, {pipeline_mode = #tpu.pipeline_mode<synchronous>, transform_indices = @transform_8, window_bounds = array<i64: 4, 1, 8>}, {pipeline_mode = #tpu.pipeline_mode<synchronous>, transform_indices = @transform_9, window_bounds = array<i64: 4, 8, 32>}, {pipeline_mode = #tpu.pipeline_mode<synchronous>, transform_indices = @transform_10, window_bounds = array<i64: 1, 32>}, {pipeline_mode = #tpu.pipeline_mode<synchronous>, transform_indices = @transform_11, window_bounds = array<i64: 1, 32>}, {pipeline_mode = #tpu.pipeline_mode<synchronous>, transform_indices = @transform_12, window_bounds = array<i64: 1, 32>}, {transform_indices = @transform_13, window_bounds = array<i64: 1, 8, 32>}]} {
    %c0 = arith.constant 0 : index
    %c0_0 = arith.constant 0 : index
    %c0_1 = arith.constant 0 : index
    %0 = vector.load %arg1[%c0, %c0_0, %c0_1] : memref<1x8x32xf32, #tpu.memory_space<vmem>>, vector<1x8x32xf32>
    %1 = vector.shape_cast %0 : vector<1x8x32xf32> to vector<8x32xf32>
    %c0_2 = arith.constant 0 : index
    %c0_3 = arith.constant 0 : index
    %c0_4 = arith.constant 0 : index
    %2 = vector.load %arg2[%c0_2, %c0_3, %c0_4] : memref<1x8x32xf32, #tpu.memory_space<vmem>>, vector<1x8x32xf32>
    %3 = vector.shape_cast %2 : vector<1x8x32xf32> to vector<8x32xf32>
    %4 = vector.shape_cast %1 : vector<8x32xf32> to vector<1x8x32xf32>
    %5 = vector.shape_cast %4 : vector<1x8x32xf32> to vector<1x8x32xf32>
    %6 = vector.broadcast %5 : vector<1x8x32xf32> to vector<4x8x32xf32>
    %7 = vector.shape_cast %3 : vector<8x32xf32> to vector<1x8x32xf32>
    %8 = vector.shape_cast %7 : vector<1x8x32xf32> to vector<1x8x32xf32>
    %9 = vector.broadcast %8 : vector<1x8x32xf32> to vector<4x8x32xf32>
    %c0_5 = arith.constant 0 : index
    %c0_6 = arith.constant 0 : index
    %c0_7 = arith.constant 0 : index
    %10 = vector.load %arg4[%c0_5, %c0_6, %c0_7] : memref<4x32x8xf32, #tpu.memory_space<vmem>>, vector<4x32x8xf32>
    %cst = arith.constant dense<0.000000e+00> : vector<4x8x8xf32>
    %11 = tpu.matmul %6, %10, %cst {dimension_numbers = #tpu.dot_dimension_numbers<[2], [1], [1], [2], [0, 0, 0, 1, 1, 2], [0], [0]>} : vector<4x8x32xf32>, vector<4x32x8xf32>, vector<4x8x8xf32> -> vector<4x8x8xf32>
    %c0_8 = arith.constant 0 : index
    %c0_9 = arith.constant 0 : index
    %c0_10 = arith.constant 0 : index
    %12 = vector.load %arg5[%c0_8, %c0_9, %c0_10] : memref<4x1x8xf32, #tpu.memory_space<vmem>>, vector<4x1x8xf32>
    %13 = vector.broadcast %12 : vector<4x1x8xf32> to vector<4x8x8xf32>
    %14 = arith.addf %11, %13 : vector<4x8x8xf32>
    %c0_11 = arith.constant 0 : index
    %c0_12 = arith.constant 0 : index
    %c0_13 = arith.constant 0 : index
    %15 = vector.load %arg6[%c0_11, %c0_12, %c0_13] : memref<4x32x8xf32, #tpu.memory_space<vmem>>, vector<4x32x8xf32>
    %cst_14 = arith.constant dense<0.000000e+00> : vector<4x8x8xf32>
    %16 = tpu.matmul %9, %15, %cst_14 {dimension_numbers = #tpu.dot_dimension_numbers<[2], [1], [1], [2], [0, 0, 0, 1, 1, 2], [0], [0]>} : vector<4x8x32xf32>, vector<4x32x8xf32>, vector<4x8x8xf32> -> vector<4x8x8xf32>
    %c0_15 = arith.constant 0 : index
    %c0_16 = arith.constant 0 : index
    %c0_17 = arith.constant 0 : index
    %17 = vector.load %arg7[%c0_15, %c0_16, %c0_17] : memref<4x1x8xf32, #tpu.memory_space<vmem>>, vector<4x1x8xf32>
    %18 = vector.broadcast %17 : vector<4x1x8xf32> to vector<4x8x8xf32>
    %19 = arith.addf %16, %18 : vector<4x8x8xf32>
    %c0_18 = arith.constant 0 : index
    %c0_19 = arith.constant 0 : index
    %c0_20 = arith.constant 0 : index
    %20 = vector.load %arg8[%c0_18, %c0_19, %c0_20] : memref<4x32x8xf32, #tpu.memory_space<vmem>>, vector<4x32x8xf32>
    %cst_21 = arith.constant dense<0.000000e+00> : vector<4x8x8xf32>
    %21 = tpu.matmul %9, %20, %cst_21 {dimension_numbers = #tpu.dot_dimension_numbers<[2], [1], [1], [2], [0, 0, 0, 1, 1, 2], [0], [0]>} : vector<4x8x32xf32>, vector<4x32x8xf32>, vector<4x8x8xf32> -> vector<4x8x8xf32>
    %c0_22 = arith.constant 0 : index
    %c0_23 = arith.constant 0 : index
    %c0_24 = arith.constant 0 : index
    %22 = vector.load %arg9[%c0_22, %c0_23, %c0_24] : memref<4x1x8xf32, #tpu.memory_space<vmem>>, vector<4x1x8xf32>
    %23 = vector.broadcast %22 : vector<4x1x8xf32> to vector<4x8x8xf32>
    %24 = arith.addf %21, %23 : vector<4x8x8xf32>
    %cst_25 = arith.constant dense<0.000000e+00> : vector<4x8x8xf32>
    %25 = tpu.matmul %14, %19, %cst_25 {dimension_numbers = #tpu.dot_dimension_numbers<[2], [2], [1], [1], [0, 0, 0, 1, 1, 1], [0], [0]>} : vector<4x8x8xf32>, vector<4x8x8xf32>, vector<4x8x8xf32> -> vector<4x8x8xf32>
    %cst_26 = arith.constant 0.353553385 : f32
    %26 = vector.broadcast %cst_26 : f32 to vector<4x8x8xf32>
    %27 = arith.mulf %25, %26 : vector<4x8x8xf32>
    %c0_27 = arith.constant 0 : index
    %c0_28 = arith.constant 0 : index
    %c0_29 = arith.constant 0 : index
    %c0_30 = arith.constant 0 : index
    %28 = vector.load %arg3[%c0_27, %c0_28, %c0_29, %c0_30] : memref<1x1x8x8xf32, #tpu.memory_space<vmem>>, vector<1x1x8x8xf32>
    %29 = vector.shape_cast %28 : vector<1x1x8x8xf32> to vector<1x8x8xf32>
    %cst_31 = arith.constant 0.000000e+00 : f32
    %30 = vector.broadcast %cst_31 : f32 to vector<1x8x8xf32>
    %31 = arith.cmpf oeq, %29, %30 : vector<1x8x8xf32>
    %cst_32 = arith.constant -1.000000e+10 : f32
    %32 = vector.shape_cast %31 : vector<1x8x8xi1> to vector<1x8x8xi1>
    %33 = vector.broadcast %32 : vector<1x8x8xi1> to vector<4x8x8xi1>
    %34 = vector.broadcast %cst_32 : f32 to vector<4x8x8xf32>
    %35 = arith.select %33, %34, %27 : vector<4x8x8xi1>, vector<4x8x8xf32>
    %cst_33 = arith.constant dense<0xFF800000> : vector<4x8xf32>
    %36 = vector.multi_reduction <maximumf>, %35, %cst_33 [2] : vector<4x8x8xf32> to vector<4x8xf32>
    %37 = vector.shape_cast %36 : vector<4x8xf32> to vector<4x8x1xf32>
    %38 = vector.broadcast %37 : vector<4x8x1xf32> to vector<4x8x8xf32>
    %39 = arith.subf %35, %38 : vector<4x8x8xf32>
    %40 = math.exp %39 : vector<4x8x8xf32>
    %cst_34 = arith.constant dense<0.000000e+00> : vector<4x8xf32>
    %41 = vector.multi_reduction <add>, %40, %cst_34 [2] : vector<4x8x8xf32> to vector<4x8xf32>
    %42 = vector.shape_cast %41 : vector<4x8xf32> to vector<4x8x1xf32>
    %43 = tpu.reciprocal %42 {approx = true} : vector<4x8x1xf32> -> vector<4x8x1xf32>
    %44 = vector.broadcast %43 : vector<4x8x1xf32> to vector<4x8x8xf32>
    %45 = arith.mulf %40, %44 : vector<4x8x8xf32>
    %cst_35 = arith.constant dense<0.000000e+00> : vector<4x8x8xf32>
    %46 = tpu.matmul %45, %24, %cst_35 {dimension_numbers = #tpu.dot_dimension_numbers<[2], [1], [1], [2], [0, 0, 0, 1, 1, 2], [0], [0]>} : vector<4x8x8xf32>, vector<4x8x8xf32>, vector<4x8x8xf32> -> vector<4x8x8xf32>
    %c0_36 = arith.constant 0 : index
    %c0_37 = arith.constant 0 : index
    %c0_38 = arith.constant 0 : index
    %47 = vector.load %arg10[%c0_36, %c0_37, %c0_38] : memref<4x8x32xf32, #tpu.memory_space<vmem>>, vector<4x8x32xf32>
    %cst_39 = arith.constant dense<0.000000e+00> : vector<4x8x32xf32>
    %48 = tpu.matmul %46, %47, %cst_39 {dimension_numbers = #tpu.dot_dimension_numbers<[2], [1], [1], [2], [0, 0, 0, 1, 1, 2], [0], [0]>} : vector<4x8x8xf32>, vector<4x8x32xf32>, vector<4x8x32xf32> -> vector<4x8x32xf32>
    %cst_40 = arith.constant dense<0.000000e+00> : vector<8x32xf32>
    %49 = vector.multi_reduction <add>, %48, %cst_40 [0] : vector<4x8x32xf32> to vector<8x32xf32>
    %50 = arith.addf %1, %49 : vector<8x32xf32>
    %c0_41 = arith.constant 0 : index
    %c0_42 = arith.constant 0 : index
    %51 = vector.load %arg11[%c0_41, %c0_42] : memref<1x32xf32, #tpu.memory_space<vmem>>, vector<1x32xf32>
    %52 = vector.broadcast %51 : vector<1x32xf32> to vector<8x32xf32>
    %53 = arith.addf %50, %52 : vector<8x32xf32>
    %cst_43 = arith.constant dense<0.000000e+00> : vector<8xf32>
    %54 = vector.multi_reduction <add>, %53, %cst_43 [1] : vector<8x32xf32> to vector<8xf32>
    %55 = vector.shape_cast %54 : vector<8xf32> to vector<8x1xf32>
    %cst_44 = arith.constant 3.200000e+01 : f32
    %56 = vector.broadcast %cst_44 : f32 to vector<8x1xf32>
    %57 = arith.divf %55, %56 : vector<8x1xf32>
    %58 = vector.broadcast %57 : vector<8x1xf32> to vector<8x32xf32>
    %59 = arith.subf %53, %58 : vector<8x32xf32>
    %60 = vector.broadcast %57 : vector<8x1xf32> to vector<8x32xf32>
    %61 = arith.subf %53, %60 : vector<8x32xf32>
    %62 = arith.mulf %59, %61 : vector<8x32xf32>
    %cst_45 = arith.constant dense<0.000000e+00> : vector<8xf32>
    %63 = vector.multi_reduction <add>, %62, %cst_45 [1] : vector<8x32xf32> to vector<8xf32>
    %64 = vector.shape_cast %63 : vector<8xf32> to vector<8x1xf32>
    %cst_46 = arith.constant 3.200000e+01 : f32
    %65 = vector.broadcast %cst_46 : f32 to vector<8x1xf32>
    %66 = arith.divf %64, %65 : vector<8x1xf32>
    %67 = vector.broadcast %57 : vector<8x1xf32> to vector<8x32xf32>
    %68 = arith.subf %53, %67 : vector<8x32xf32>
    %cst_47 = arith.constant 9.99999974E-6 : f32
    %69 = vector.broadcast %cst_47 : f32 to vector<8x1xf32>
    %70 = arith.addf %66, %69 : vector<8x1xf32>
    %71 = math.rsqrt %70 : vector<8x1xf32>
    %72 = vector.broadcast %71 : vector<8x1xf32> to vector<8x32xf32>
    %73 = arith.mulf %68, %72 : vector<8x32xf32>
    %c0_48 = arith.constant 0 : index
    %c0_49 = arith.constant 0 : index
    %74 = vector.load %arg12[%c0_48, %c0_49] : memref<1x32xf32, #tpu.memory_space<vmem>>, vector<1x32xf32>
    %75 = vector.broadcast %74 : vector<1x32xf32> to vector<8x32xf32>
    %76 = arith.mulf %73, %75 : vector<8x32xf32>
    %c0_50 = arith.constant 0 : index
    %c0_51 = arith.constant 0 : index
    %77 = vector.load %arg13[%c0_50, %c0_51] : memref<1x32xf32, #tpu.memory_space<vmem>>, vector<1x32xf32>
    %78 = vector.broadcast %77 : vector<1x32xf32> to vector<8x32xf32>
    %79 = arith.addf %76, %78 : vector<8x32xf32>
    %c0_52 = arith.constant 0 : index
    %c0_53 = arith.constant 0 : index
    %c0_54 = arith.constant 0 : index
    %80 = vector.load %arg14[%c0_52, %c0_53, %c0_54] : memref<1x8x32xf32, #tpu.memory_space<vmem>>, vector<1x8x32xf32>
    %81 = vector.shape_cast %80 : vector<1x8x32xf32> to vector<8x32xf32>
    %82 = vector.shape_cast %79 : vector<8x32xf32> to vector<1x8x32xf32>
    tpu.vector_store %arg14[%c0_52, %c0_53, %c0_54], %82 {strides = array<i32>} : memref<1x8x32xf32, #tpu.memory_space<vmem>>, vector<1x8x32xf32>,
    return
  }
  func.func @transform_0(%arg0: i32) -> (i32, i32, i32) {
    %c0_i32 = arith.constant 0 : i32
    %c0_i32_0 = arith.constant 0 : i32
    %c0_i32_1 = arith.constant 0 : i32
    return %arg0, %c0_i32, %c0_i32_0 : i32, i32, i32
  }
  func.func @transform_1(%arg0: i32) -> (i32, i32, i32) {
    %c0_i32 = arith.constant 0 : i32
    %c0_i32_0 = arith.constant 0 : i32
    %c0_i32_1 = arith.constant 0 : i32
    return %arg0, %c0_i32, %c0_i32_0 : i32, i32, i32
  }
  func.func @transform_2(%arg0: i32) -> (i32, i32, i32, i32) {
    %c0_i32 = arith.constant 0 : i32
    %c0_i32_0 = arith.constant 0 : i32
    %c0_i32_1 = arith.constant 0 : i32
    %c0_i32_2 = arith.constant 0 : i32
    return %arg0, %c0_i32, %c0_i32_0, %c0_i32_1 : i32, i32, i32, i32
  }
  func.func @transform_3(%arg0: i32) -> (i32, i32, i32) {
    %c0_i32 = arith.constant 0 : i32
    %c0_i32_0 = arith.constant 0 : i32
    %c0_i32_1 = arith.constant 0 : i32
    %c0_i32_2 = arith.constant 0 : i32
    return %c0_i32, %c0_i32_0, %c0_i32_1 : i32, i32, i32
  }
  func.func @transform_4(%arg0: i32) -> (i32, i32, i32) {
    %c0_i32 = arith.constant 0 : i32
    %c0_i32_0 = arith.constant 0 : i32
    %c0_i32_1 = arith.constant 0 : i32
    %c0_i32_2 = arith.constant 0 : i32
    return %c0_i32, %c0_i32_0, %c0_i32_1 : i32, i32, i32
  }
  func.func @transform_5(%arg0: i32) -> (i32, i32, i32) {
    %c0_i32 = arith.constant 0 : i32
    %c0_i32_0 = arith.constant 0 : i32
    %c0_i32_1 = arith.constant 0 : i32
    %c0_i32_2 = arith.constant 0 : i32
    return %c0_i32, %c0_i32_0, %c0_i32_1 : i32, i32, i32
  }
  func.func @transform_6(%arg0: i32) -> (i32, i32, i32) {
    %c0_i32 = arith.constant 0 : i32
    %c0_i32_0 = arith.constant 0 : i32
    %c0_i32_1 = arith.constant 0 : i32
    %c0_i32_2 = arith.constant 0 : i32
    return %c0_i32, %c0_i32_0, %c0_i32_1 : i32, i32, i32
  }
  func.func @transform_7(%arg0: i32) -> (i32, i32, i32) {
    %c0_i32 = arith.constant 0 : i32
    %c0_i32_0 = arith.constant 0 : i32
    %c0_i32_1 = arith.constant 0 : i32
    %c0_i32_2 = arith.constant 0 : i32
    return %c0_i32, %c0_i32_0, %c0_i32_1 : i32, i32, i32
  }
  func.func @transform_8(%arg0: i32) -> (i32, i32, i32) {
    %c0_i32 = arith.constant 0 : i32
    %c0_i32_0 = arith.constant 0 : i32
    %c0_i32_1 = arith.constant 0 : i32
    %c0_i32_2 = arith.constant 0 : i32
    return %c0_i32, %c0_i32_0, %c0_i32_1 : i32, i32, i32
  }
  func.func @transform_9(%arg0: i32) -> (i32, i32, i32) {
    %c0_i32 = arith.constant 0 : i32
    %c0_i32_0 = arith.constant 0 : i32
    %c0_i32_1 = arith.constant 0 : i32
    %c0_i32_2 = arith.constant 0 : i32
    return %c0_i32, %c0_i32_0, %c0_i32_1 : i32, i32, i32
  }
  func.func @transform_10(%arg0: i32) -> (i32, i32) {
    %c0_i32 = arith.constant 0 : i32
    %c0_i32_0 = arith.constant 0 : i32
    %c0_i32_1 = arith.constant 0 : i32
    return %c0_i32, %c0_i32_0 : i32, i32
  }
  func.func @transform_11(%arg0: i32) -> (i32, i32) {
    %c0_i32 = arith.constant 0 : i32
    %c0_i32_0 = arith.constant 0 : i32
    %c0_i32_1 = arith.constant 0 : i32
    return %c0_i32, %c0_i32_0 : i32, i32
  }
  func.func @transform_12(%arg0: i32) -> (i32, i32) {
    %c0_i32 = arith.constant 0 : i32
    %c0_i32_0 = arith.constant 0 : i32
    %c0_i32_1 = arith.constant 0 : i32
    return %c0_i32, %c0_i32_0 : i32, i32
  }
  func.func @transform_13(%arg0: i32) -> (i32, i32, i32) {
    %c0_i32 = arith.constant 0 : i32
    %c0_i32_0 = arith.constant 0 : i32
    %c0_i32_1 = arith.constant 0 : i32
    return %arg0, %c0_i32, %c0_i32_0 : i32, i32, i32
  }
}

</mosaic_0001>

<llo_original>
// kernel: tpu_custom_call.1
$region0: #{tpu_custom_call.1}
  #allocation0 [shape = 'u32[]', space=smem, size = 0x4, offset = 0x4, fixed_abs, tag = 'smem constant byte address 0x4 - core index']
  #allocation1 [shape = 'u32[72,128]{1,0:T(1,128)}', space=vmem, size = 0x9000, scoped, tag = 'internal scratch']
  %s0 = inlined_call_operand.vmem [shape: f32[2,8,32], index: 0, kind: input, shape index: {}]
  %s1 = inlined_call_operand.vmem [shape: f32[2,8,32], index: 1, kind: input, shape index: {}]
  %s2 = inlined_call_operand.vmem [shape: f32[2,1,8,8], index: 2, kind: input, shape index: {}]
  %s3 = inlined_call_operand.vmem [shape: f32[4,32,8], index: 3, kind: input, shape index: {}]
  %s4 = inlined_call_operand.vmem [shape: f32[4,1,8], index: 4, kind: input, shape index: {}]
  %s5 = inlined_call_operand.vmem [shape: f32[4,32,8], index: 5, kind: input, shape index: {}]
  %s6 = inlined_call_operand.vmem [shape: f32[4,1,8], index: 6, kind: input, shape index: {}]
  %s7 = inlined_call_operand.vmem [shape: f32[4,32,8], index: 7, kind: input, shape index: {}]
  %s8 = inlined_call_operand.vmem [shape: f32[4,1,8], index: 8, kind: input, shape index: {}]
  %s9 = inlined_call_operand.vmem [shape: f32[4,8,32], index: 9, kind: input, shape index: {}]
  %s10 = inlined_call_operand.vmem [shape: f32[1,32], index: 10, kind: input, shape index: {}]
  %s11 = inlined_call_operand.vmem [shape: f32[1,32], index: 11, kind: input, shape index: {}]
  %s12 = inlined_call_operand.vmem [shape: f32[1,32], index: 12, kind: input, shape index: {}]
  %s13 = inlined_call_operand.hbm [shape: f32[2,8,32], index: 13, kind: output, shape index: {}]
  %s14 = sld [smem:[#allocation0]]
  $region85: #{tpu_custom_call.1} parent=0
    _
  %s16 = ssub.s32 1, %s14
  %s17 = scalar_select 0, %s16, %s14
  $region1: #{tpu_custom_call.1} parent=0
    #allocation2 [shape = 'u8[8192]{0}', space=vmem, size = 0x2000, scoped, tag = 'output window, operand 0']
    #allocation3 [shape = 's32[2]{0}', space=sflag, size = 0x8, scoped, tag = 'scoped memory for tpu_custom_call.1']
    %18 = vsyncpa [#allocation3], 0
    %s19 = scalar_lea.sflag [#allocation3], 1
    %20 = vsyncpa %s19, 0
    loop: start=0, step=1, limit=4
    $region2: #{tpu_custom_call.1} parent=1 // loop_pre_header
      _
    $region3: #{tpu_custom_call.1} parent=1 // loop_header
      %s22 = sphi 0, %s26
      %p23 = scmp.ge.s32.totalorder %s22, 4
      %s32 = sphi 0, %s34
      %s35 = sphi 0, %s32
      %s36 = sphi 0, %s35
      %s52 = sphi 0, %s36
      %s58 = sphi 0, %s60
      %s61 = sphi 0, %s58
      %s62 = sphi 0, %s61
      %s78 = sphi 0, %s62
      %s84 = sphi 0, %s86
      %s87 = sphi 0, %s84
      %s88 = sphi 0, %s87
      %s104 = sphi 0, %s88
      %s108 = sphi 0, %s108
      %s110 = sphi 0, %s108
      %s111 = sphi 0, %s110
      %s125 = sphi 0, %s111
      %s129 = sphi 0, %s129
      %s131 = sphi 0, %s129
      %s132 = sphi 0, %s131
      %s146 = sphi 0, %s132
      %s150 = sphi 0, %s150
      %s152 = sphi 0, %s150
      %s153 = sphi 0, %s152
      %s167 = sphi 0, %s153
      %s171 = sphi 0, %s171
      %s173 = sphi 0, %s171
      %s174 = sphi 0, %s173
      %s188 = sphi 0, %s174
      %s192 = sphi 0, %s192
      %s194 = sphi 0, %s192
      %s195 = sphi 0, %s194
      %s209 = sphi 0, %s195
      %s213 = sphi 0, %s213
      %s215 = sphi 0, %s213
      %s216 = sphi 0, %s215
      %s230 = sphi 0, %s216
      %s234 = sphi 0, %s234
      %s236 = sphi 0, %s234
      %s237 = sphi 0, %s236
      %s251 = sphi 0, %s237
      %s255 = sphi 0, %s255
      %s257 = sphi 0, %s255
      %s258 = sphi 0, %s257
      %s272 = sphi 0, %s258
      %s276 = sphi 0, %s276
      %s278 = sphi 0, %s276
      %s279 = sphi 0, %s278
      %s293 = sphi 0, %s279
      %s297 = sphi 0, %s297
      %s299 = sphi 0, %s297
      %s300 = sphi 0, %s299
      %s314 = sphi 0, %s300
      %s320 = sphi 0, %s322
      %s323 = sphi 0, %s320
      %s324 = sphi 0, %s323
      %s340 = sphi 0, %s324
    $region4: #{tpu_custom_call.1} parent=1 // loop_header_branch
      %25 = sbr.rel (%p23) target = $region8
    $region5: #{tpu_custom_call.1} parent=1 // loop_body
      %s27 = ssub.s32 %s22, 1
      %s28 = ssub.s32 %s22, 2
      %s29 = sadd.s32 %s22, 1
      %s30 = ssub.s32 %s22, %s29
      %p31 = scmp.eq.s32.totalorder %s30, 0
      %s33 = sadd.s32 %s32, 1
      %s34 = scalar_select %p31, %s32, %s33
      %p37 = pneg %p31
      %p38 = scmp.eq.s32.totalorder %s22, 1
      %p39 = por %p37, %p38
      %p40 = scmp.ne.s32.totalorder %s32, %s35
      %p41 = scmp.eq.s32.totalorder %s22, 0
      %p42 = por %p40, %p41
      %p43 = scmp.ne.s32.totalorder %s32, %s35
      %p44 = scmp.eq.s32.totalorder %s27, 1
      %p45 = por %p43, %p44
      %p46 = scmp.ne.s32.totalorder %s35, %s36
      %p47 = scmp.eq.s32.totalorder %s27, 0
      %p48 = por %p46, %p47
      %p49 = scmp.ne.s32.totalorder %s35, %s36
      %p50 = scmp.eq.s32.totalorder %s28, 1
      %p51 = por %p49, %p50
      %p53 = scmp.ne.s32.totalorder %s36, %s52
      %p54 = scmp.eq.s32.totalorder %s28, 0
      %p55 = por %p53, %p54
      %s56 = ssub.s32 %s22, %s29
      %p57 = scmp.eq.s32.totalorder %s56, 0
      %s59 = sadd.s32 %s58, 1
      %s60 = scalar_select %p57, %s58, %s59
      %p63 = pneg %p57
      %p64 = scmp.eq.s32.totalorder %s22, 1
      %p65 = por %p63, %p64
      %p66 = scmp.ne.s32.totalorder %s58, %s61
      %p67 = scmp.eq.s32.totalorder %s22, 0
      %p68 = por %p66, %p67
      %p69 = scmp.ne.s32.totalorder %s58, %s61
      %p70 = scmp.eq.s32.totalorder %s27, 1
      %p71 = por %p69, %p70
      %p72 = scmp.ne.s32.totalorder %s61, %s62
      %p73 = scmp.eq.s32.totalorder %s27, 0
      %p74 = por %p72, %p73
      %p75 = scmp.ne.s32.totalorder %s61, %s62
      %p76 = scmp.eq.s32.totalorder %s28, 1
      %p77 = por %p75, %p76
      %p79 = scmp.ne.s32.totalorder %s62, %s78
      %p80 = scmp.eq.s32.totalorder %s28, 0
      %p81 = por %p79, %p80
      %s82 = ssub.s32 %s22, %s29
      %p83 = scmp.eq.s32.totalorder %s82, 0
      %s85 = sadd.s32 %s84, 1
      %s86 = scalar_select %p83, %s84, %s85
      %p89 = pneg %p83
      %p90 = scmp.eq.s32.totalorder %s22, 1
      %p91 = por %p89, %p90
      %p92 = scmp.ne.s32.totalorder %s84, %s87
      %p93 = scmp.eq.s32.totalorder %s22, 0
      %p94 = por %p92, %p93
      %p95 = scmp.ne.s32.totalorder %s84, %s87
      %p96 = scmp.eq.s32.totalorder %s27, 1
      %p97 = por %p95, %p96
      %p98 = scmp.ne.s32.totalorder %s87, %s88
      %p99 = scmp.eq.s32.totalorder %s27, 0
      %p100 = por %p98, %p99
      %p101 = scmp.ne.s32.totalorder %s87, %s88
      %p102 = scmp.eq.s32.totalorder %s28, 1
      %p103 = por %p101, %p102
      %p105 = scmp.ne.s32.totalorder %s88, %s104
      %p106 = scmp.eq.s32.totalorder %s28, 0
      %p107 = por %p105, %p106
      %s109 = sadd.s32 %s108, 1
      %p112 = scmp.eq.s32.totalorder %s22, 1
      %p113 = scmp.ne.s32.totalorder %s108, %s110
      %p114 = scmp.eq.s32.totalorder %s22, 0
      %p115 = por %p113, %p114
      %p116 = scmp.ne.s32.totalorder %s108, %s110
      %p117 = scmp.eq.s32.totalorder %s27, 1
      %p118 = por %p116, %p117
      %p119 = scmp.ne.s32.totalorder %s110, %s111
      %p120 = scmp.eq.s32.totalorder %s27, 0
      %p121 = por %p119, %p120
      %p122 = scmp.ne.s32.totalorder %s110, %s111
      %p123 = scmp.eq.s32.totalorder %s28, 1
      %p124 = por %p122, %p123
      %p126 = scmp.ne.s32.totalorder %s111, %s125
      %p127 = scmp.eq.s32.totalorder %s28, 0
      %p128 = por %p126, %p127
      %s130 = sadd.s32 %s129, 1
      %p133 = scmp.eq.s32.totalorder %s22, 1
      %p134 = scmp.ne.s32.totalorder %s129, %s131
      %p135 = scmp.eq.s32.totalorder %s22, 0
      %p136 = por %p134, %p135
      %p137 = scmp.ne.s32.totalorder %s129, %s131
      %p138 = scmp.eq.s32.totalorder %s27, 1
      %p139 = por %p137, %p138
      %p140 = scmp.ne.s32.totalorder %s131, %s132
      %p141 = scmp.eq.s32.totalorder %s27, 0
      %p142 = por %p140, %p141
      %p143 = scmp.ne.s32.totalorder %s131, %s132
      %p144 = scmp.eq.s32.totalorder %s28, 1
      %p145 = por %p143, %p144
      %p147 = scmp.ne.s32.totalorder %s132, %s146
      %p148 = scmp.eq.s32.totalorder %s28, 0
      %p149 = por %p147, %p148
      %s151 = sadd.s32 %s150, 1
      %p154 = scmp.eq.s32.totalorder %s22, 1
      %p155 = scmp.ne.s32.totalorder %s150, %s152
      %p156 = scmp.eq.s32.totalorder %s22, 0
      %p157 = por %p155, %p156
      %p158 = scmp.ne.s32.totalorder %s150, %s152
      %p159 = scmp.eq.s32.totalorder %s27, 1
      %p160 = por %p158, %p159
      %p161 = scmp.ne.s32.totalorder %s152, %s153
      %p162 = scmp.eq.s32.totalorder %s27, 0
      %p163 = por %p161, %p162
      %p164 = scmp.ne.s32.totalorder %s152, %s153
      %p165 = scmp.eq.s32.totalorder %s28, 1
      %p166 = por %p164, %p165
      %p168 = scmp.ne.s32.totalorder %s153, %s167
      %p169 = scmp.eq.s32.totalorder %s28, 0
      %p170 = por %p168, %p169
      %s172 = sadd.s32 %s171, 1
      %p175 = scmp.eq.s32.totalorder %s22, 1
      %p176 = scmp.ne.s32.totalorder %s171, %s173
      %p177 = scmp.eq.s32.totalorder %s22, 0
      %p178 = por %p176, %p177
      %p179 = scmp.ne.s32.totalorder %s171, %s173
      %p180 = scmp.eq.s32.totalorder %s27, 1
      %p181 = por %p179, %p180
      %p182 = scmp.ne.s32.totalorder %s173, %s174
      %p183 = scmp.eq.s32.totalorder %s27, 0
      %p184 = por %p182, %p183
      %p185 = scmp.ne.s32.totalorder %s173, %s174
      %p186 = scmp.eq.s32.totalorder %s28, 1
      %p187 = por %p185, %p186
      %p189 = scmp.ne.s32.totalorder %s174, %s188
      %p190 = scmp.eq.s32.totalorder %s28, 0
      %p191 = por %p189, %p190
      %s193 = sadd.s32 %s192, 1
      %p196 = scmp.eq.s32.totalorder %s22, 1
      %p197 = scmp.ne.s32.totalorder %s192, %s194
      %p198 = scmp.eq.s32.totalorder %s22, 0
      %p199 = por %p197, %p198
      %p200 = scmp.ne.s32.totalorder %s192, %s194
      %p201 = scmp.eq.s32.totalorder %s27, 1
      %p202 = por %p200, %p201
      %p203 = scmp.ne.s32.totalorder %s194, %s195
      %p204 = scmp.eq.s32.totalorder %s27, 0
      %p205 = por %p203, %p204
      %p206 = scmp.ne.s32.totalorder %s194, %s195
      %p207 = scmp.eq.s32.totalorder %s28, 1
      %p208 = por %p206, %p207
      %p210 = scmp.ne.s32.totalorder %s195, %s209
      %p211 = scmp.eq.s32.totalorder %s28, 0
      %p212 = por %p210, %p211
      %s214 = sadd.s32 %s213, 1
      %p217 = scmp.eq.s32.totalorder %s22, 1
      %p218 = scmp.ne.s32.totalorder %s213, %s215
      %p219 = scmp.eq.s32.totalorder %s22, 0
      %p220 = por %p218, %p219
      %p221 = scmp.ne.s32.totalorder %s213, %s215
      %p222 = scmp.eq.s32.totalorder %s27, 1
      %p223 = por %p221, %p222
      %p224 = scmp.ne.s32.totalorder %s215, %s216
      %p225 = scmp.eq.s32.totalorder %s27, 0
      %p226 = por %p224, %p225
      %p227 = scmp.ne.s32.totalorder %s215, %s216
      %p228 = scmp.eq.s32.totalorder %s28, 1
      %p229 = por %p227, %p228
      %p231 = scmp.ne.s32.totalorder %s216, %s230
      %p232 = scmp.eq.s32.totalorder %s28, 0
      %p233 = por %p231, %p232
      %s235 = sadd.s32 %s234, 1
      %p238 = scmp.eq.s32.totalorder %s22, 1
      %p239 = scmp.ne.s32.totalorder %s234, %s236
      %p240 = scmp.eq.s32.totalorder %s22, 0
      %p241 = por %p239, %p240
      %p242 = scmp.ne.s32.totalorder %s234, %s236
      %p243 = scmp.eq.s32.totalorder %s27, 1
      %p244 = por %p242, %p243
      %p245 = scmp.ne.s32.totalorder %s236, %s237
      %p246 = scmp.eq.s32.totalorder %s27, 0
      %p247 = por %p245, %p246
      %p248 = scmp.ne.s32.totalorder %s236, %s237
      %p249 = scmp.eq.s32.totalorder %s28, 1
      %p250 = por %p248, %p249
      %p252 = scmp.ne.s32.totalorder %s237, %s251
      %p253 = scmp.eq.s32.totalorder %s28, 0
      %p254 = por %p252, %p253
      %s256 = sadd.s32 %s255, 1
      %p259 = scmp.eq.s32.totalorder %s22, 1
      %p260 = scmp.ne.s32.totalorder %s255, %s257
      %p261 = scmp.eq.s32.totalorder %s22, 0
      %p262 = por %p260, %p261
      %p263 = scmp.ne.s32.totalorder %s255, %s257
      %p264 = scmp.eq.s32.totalorder %s27, 1
      %p265 = por %p263, %p264
      %p266 = scmp.ne.s32.totalorder %s257, %s258
      %p267 = scmp.eq.s32.totalorder %s27, 0
      %p268 = por %p266, %p267
      %p269 = scmp.ne.s32.totalorder %s257, %s258
      %p270 = scmp.eq.s32.totalorder %s28, 1
      %p271 = por %p269, %p270
      %p273 = scmp.ne.s32.totalorder %s258, %s272
      %p274 = scmp.eq.s32.totalorder %s28, 0
      %p275 = por %p273, %p274
      %s277 = sadd.s32 %s276, 1
      %p280 = scmp.eq.s32.totalorder %s22, 1
      %p281 = scmp.ne.s32.totalorder %s276, %s278
      %p282 = scmp.eq.s32.totalorder %s22, 0
      %p283 = por %p281, %p282
      %p284 = scmp.ne.s32.totalorder %s276, %s278
      %p285 = scmp.eq.s32.totalorder %s27, 1
      %p286 = por %p284, %p285
      %p287 = scmp.ne.s32.totalorder %s278, %s279
      %p288 = scmp.eq.s32.totalorder %s27, 0
      %p289 = por %p287, %p288
      %p290 = scmp.ne.s32.totalorder %s278, %s279
      %p291 = scmp.eq.s32.totalorder %s28, 1
      %p292 = por %p290, %p291
      %p294 = scmp.ne.s32.totalorder %s279, %s293
      %p295 = scmp.eq.s32.totalorder %s28, 0
      %p296 = por %p294, %p295
      %s298 = sadd.s32 %s297, 1
      %p301 = scmp.eq.s32.totalorder %s22, 1
      %p302 = scmp.ne.s32.totalorder %s297, %s299
      %p303 = scmp.eq.s32.totalorder %s22, 0
      %p304 = por %p302, %p303
      %p305 = scmp.ne.s32.totalorder %s297, %s299
      %p306 = scmp.eq.s32.totalorder %s27, 1
      %p307 = por %p305, %p306
      %p308 = scmp.ne.s32.totalorder %s299, %s300
      %p309 = scmp.eq.s32.totalorder %s27, 0
      %p310 = por %p308, %p309
      %p311 = scmp.ne.s32.totalorder %s299, %s300
      %p312 = scmp.eq.s32.totalorder %s28, 1
      %p313 = por %p311, %p312
      %p315 = scmp.ne.s32.totalorder %s300, %s314
      %p316 = scmp.eq.s32.totalorder %s28, 0
      %p317 = por %p315, %p316
      %s318 = ssub.s32 %s22, %s29
      %p319 = scmp.eq.s32.totalorder %s318, 0
      %s321 = sadd.s32 %s320, 1
      %s322 = scalar_select %p319, %s320, %s321
      %p325 = pneg %p319
      %p326 = scmp.eq.s32.totalorder %s22, 1
      %p327 = por %p325, %p326
      %p328 = scmp.ne.s32.totalorder %s320, %s323
      %p329 = scmp.eq.s32.totalorder %s22, 0
      %p330 = por %p328, %p329
      %p331 = scmp.ne.s32.totalorder %s320, %s323
      %p332 = scmp.eq.s32.totalorder %s27, 1
      %p333 = por %p331, %p332
      %p334 = scmp.ne.s32.totalorder %s323, %s324
      %p335 = scmp.eq.s32.totalorder %s27, 0
      %p336 = por %p334, %p335
      %p337 = scmp.ne.s32.totalorder %s323, %s324
      %p338 = scmp.eq.s32.totalorder %s28, 1
      %p339 = por %p337, %p338
      %p341 = scmp.ne.s32.totalorder %s324, %s340
      %p342 = scmp.eq.s32.totalorder %s28, 0
      %p343 = por %p341, %p342
      %p344 = scmp.le.s32.totalorder 1, %s22
      %p345 = scmp.lt.s32.totalorder %s22, 3
      %p346 = pnand %p344, %p345
      %p347 = pneg %p346
      // Predicated region
      $region9: #{tpu_custom_call.1} parent=5 // pred_check
        _
      $region10: #{tpu_custom_call.1} parent=5 // pred_check_branch
        %349 = sbr.rel (%p346) target = $region12
      $region11: #{tpu_custom_call.1} parent=5 // pred_region
        %s350 = ssub.s32 %s22, 1
        // Predicated region
        $region13: #{tpu_custom_call.1} parent=11 // pred_check
          %p351 = pneg %p121
        $region14: #{tpu_custom_call.1} parent=11 // pred_check_branch
          %353 = sbr.rel (%p351) target = $region16
        $region15: #{tpu_custom_call.1} parent=11 // pred_region
          _
        $region16: #{tpu_custom_call.1} parent=11 // pred_fallthru
          _
        // Predicated region
        $region17: #{tpu_custom_call.1} parent=11 // pred_check
          %p354 = pneg %p142
        $region18: #{tpu_custom_call.1} parent=11 // pred_check_branch
          %356 = sbr.rel (%p354) target = $region20
        $region19: #{tpu_custom_call.1} parent=11 // pred_region
          _
        $region20: #{tpu_custom_call.1} parent=11 // pred_fallthru
          _
        // Predicated region
        $region21: #{tpu_custom_call.1} parent=11 // pred_check
          %p357 = pneg %p163
        $region22: #{tpu_custom_call.1} parent=11 // pred_check_branch
          %359 = sbr.rel (%p357) target = $region24
        $region23: #{tpu_custom_call.1} parent=11 // pred_region
          _
        $region24: #{tpu_custom_call.1} parent=11 // pred_fallthru
          _
        // Predicated region
        $region25: #{tpu_custom_call.1} parent=11 // pred_check
          %p360 = pneg %p184
        $region26: #{tpu_custom_call.1} parent=11 // pred_check_branch
          %362 = sbr.rel (%p360) target = $region28
        $region27: #{tpu_custom_call.1} parent=11 // pred_region
          _
        $region28: #{tpu_custom_call.1} parent=11 // pred_fallthru
          _
        // Predicated region
        $region29: #{tpu_custom_call.1} parent=11 // pred_check
          %p363 = pneg %p205
        $region30: #{tpu_custom_call.1} parent=11 // pred_check_branch
          %365 = sbr.rel (%p363) target = $region32
        $region31: #{tpu_custom_call.1} parent=11 // pred_region
          _
        $region32: #{tpu_custom_call.1} parent=11 // pred_fallthru
          _
        // Predicated region
        $region33: #{tpu_custom_call.1} parent=11 // pred_check
          %p366 = pneg %p226
        $region34: #{tpu_custom_call.1} parent=11 // pred_check_branch
          %368 = sbr.rel (%p366) target = $region36
        $region35: #{tpu_custom_call.1} parent=11 // pred_region
          _
        $region36: #{tpu_custom_call.1} parent=11 // pred_fallthru
          _
        // Predicated region
        $region37: #{tpu_custom_call.1} parent=11 // pred_check
          %p369 = pneg %p247
        $region38: #{tpu_custom_call.1} parent=11 // pred_check_branch
          %371 = sbr.rel (%p369) target = $region40
        $region39: #{tpu_custom_call.1} parent=11 // pred_region
          _
        $region40: #{tpu_custom_call.1} parent=11 // pred_fallthru
          _
        // Predicated region
        $region41: #{tpu_custom_call.1} parent=11 // pred_check
          %p372 = pneg %p268
        $region42: #{tpu_custom_call.1} parent=11 // pred_check_branch
          %374 = sbr.rel (%p372) target = $region44
        $region43: #{tpu_custom_call.1} parent=11 // pred_region
          _
        $region44: #{tpu_custom_call.1} parent=11 // pred_fallthru
          _
        // Predicated region
        $region45: #{tpu_custom_call.1} parent=11 // pred_check
          %p375 = pneg %p289
        $region46: #{tpu_custom_call.1} parent=11 // pred_check_branch
          %377 = sbr.rel (%p375) target = $region48
        $region47: #{tpu_custom_call.1} parent=11 // pred_region
          _
        $region48: #{tpu_custom_call.1} parent=11 // pred_fallthru
          _
        // Predicated region
        $region49: #{tpu_custom_call.1} parent=11 // pred_check
          %p378 = pneg %p310
        $region50: #{tpu_custom_call.1} parent=11 // pred_check_branch
          %380 = sbr.rel (%p378) target = $region52
        $region51: #{tpu_custom_call.1} parent=11 // pred_region
          _
        $region52: #{tpu_custom_call.1} parent=11 // pred_fallthru
          _
      $region12: #{tpu_custom_call.1} parent=5 // pred_fallthru
        _
      %p381 = scmp.lt.s32.totalorder %s22, 2
      // Predicated region
      $region53: #{tpu_custom_call.1} parent=5 // pred_check
        %p382 = pneg %p381
      $region54: #{tpu_custom_call.1} parent=5 // pred_check_branch
        %384 = sbr.rel (%p382) target = $region56
      $region55: #{tpu_custom_call.1} parent=5 // pred_region
        // Predicated region
        $region57: #{tpu_custom_call.1} parent=55 // pred_check
          %p385 = pneg %p42
        $region58: #{tpu_custom_call.1} parent=55 // pred_check_branch
          %387 = sbr.rel (%p385) target = $region60
        $region59: #{tpu_custom_call.1} parent=55 // pred_region
          %p388 = scmp.lt.s32.totalorder %s22, 1
          %s389 = scalar_select %p388, %s22, 1
          %s390 = smul.addr %s389, 8
          %s391 = scalar_lea.vmem %s0, %s390
        $region60: #{tpu_custom_call.1} parent=55 // pred_fallthru
          _
        // Predicated region
        $region61: #{tpu_custom_call.1} parent=55 // pred_check
          %p392 = pneg %p68
        $region62: #{tpu_custom_call.1} parent=55 // pred_check_branch
          %394 = sbr.rel (%p392) target = $region64
        $region63: #{tpu_custom_call.1} parent=55 // pred_region
          %p395 = scmp.lt.s32.totalorder %s22, 1
          %s396 = scalar_select %p395, %s22, 1
          %s397 = smul.addr %s396, 8
          %s398 = scalar_lea.vmem %s1, %s397
        $region64: #{tpu_custom_call.1} parent=55 // pred_fallthru
          _
        // Predicated region
        $region65: #{tpu_custom_call.1} parent=55 // pred_check
          %p399 = pneg %p94
        $region66: #{tpu_custom_call.1} parent=55 // pred_check_branch
          %401 = sbr.rel (%p399) target = $region68
        $region67: #{tpu_custom_call.1} parent=55 // pred_region
          %p402 = scmp.lt.s32.totalorder %s22, 1
          %s403 = scalar_select %p402, %s22, 1
          %s404 = smul.addr %s403, 8
          %s405 = scalar_lea.vmem %s2, %s404
        $region68: #{tpu_custom_call.1} parent=55 // pred_fallthru
          _
      $region56: #{tpu_custom_call.1} parent=5 // pred_fallthru
        _
      %p406 = scmp.le.s32.totalorder 1, %s22
      %p407 = scmp.lt.s32.totalorder %s22, 3
      %p408 = pnand %p406, %p407
      %p409 = pneg %p408
      // Predicated region
      $region69: #{tpu_custom_call.1} parent=5 // pred_check
        _
      $region70: #{tpu_custom_call.1} parent=5 // pred_check_branch
        %411 = sbr.rel (%p408) target = $region72
      $region71: #{tpu_custom_call.1} parent=5 // pred_region
        %s412 = ssub.s32 %s22, 1
        %p413 = scmp.lt.s32.totalorder %s27, 1
        %s414 = scalar_select %p413, %s27, 1
        %s415 = smul.addr %s414, 8
        %s416 = scalar_lea.vmem %s0, %s415
        %p417 = pneg %p48
        %p418 = pneg %p45
        %p419 = scmp.lt.s32.totalorder %s27, 1
        %s420 = scalar_select %p419, %s27, 1
        %s421 = smul.addr %s420, 8
        %s422 = scalar_lea.vmem %s1, %s421
        %p423 = pneg %p74
        %p424 = pneg %p71
        %p425 = scmp.lt.s32.totalorder %s27, 1
        %s426 = scalar_select %p425, %s27, 1
        %s427 = smul.addr %s426, 8
        %s428 = scalar_lea.vmem %s2, %s427
        %p429 = pneg %p100
        %p430 = pneg %p97
        %p431 = pneg %p121
        %p432 = pneg %p118
        %p433 = pneg %p142
        %p434 = pneg %p139
        %p435 = pneg %p163
        %p436 = pneg %p160
        %p437 = pneg %p184
        %p438 = pneg %p181
        %p439 = pneg %p205
        %p440 = pneg %p202
        %p441 = pneg %p226
        %p442 = pneg %p223
        %p443 = pneg %p247
        %p444 = pneg %p244
        %p445 = pneg %p268
        %p446 = pneg %p265
        %p447 = pneg %p289
        %p448 = pneg %p286
        %p449 = pneg %p310
        %p450 = pneg %p307
        %p451 = pneg %p336
        %p452 = pneg %p333
        %s453 = sand.u32 %s323, 1
        %s454 = scalar_lea.sflag [#allocation3], %s453
        %s455 = sand.u32 %s323, 1
        %s456 = smul.addr %s455, 8
        %s457 = scalar_lea.vmem [#allocation2], %s456
        %p458 = scmp.lt.s32.totalorder %s27, 1
        %s459 = scalar_select %p458, %s27, 1
        %s460 = smul.addr %s459, 8
        %s461 = scalar_lea.vmem %s0, %s460
        %p462 = scmp.lt.s32.totalorder %s27, 1
        %s463 = scalar_select %p462, %s27, 1
        %s464 = smul.addr %s463, 8
        %s465 = scalar_lea.vmem %s1, %s464
        %p466 = scmp.lt.s32.totalorder %s27, 1
        %s467 = scalar_select %p466, %s27, 1
        %s468 = smul.addr %s467, 8
        %s469 = scalar_lea.vmem %s2, %s468
        %v470 = vld [vmem:[%s461] sm:$0xff]
        %v471 = vld [vmem:[%s465] sm:$0xff]
        %v472 = vld [vmem:[%s3] sm:$0xff]
        %v473 = vld [vmem:[%s3 + $0x8] sm:$0xff]
        %v474 = vld [vmem:[%s3 + $0x10] sm:$0xff]
        %v475 = vld [vmem:[%s3 + $0x18] sm:$0xff]
        %v476 = vld [vmem:[%s3 + $0x20] sm:$0xff]
        %v477 = vld [vmem:[%s3 + $0x28] sm:$0xff]
        %v478 = vld [vmem:[%s3 + $0x30] sm:$0xff]
        %v479 = vld [vmem:[%s3 + $0x38] sm:$0xff]
        %v480 = vld [vmem:[%s3 + $0x40] sm:$0xff]
        %v481 = vld [vmem:[%s3 + $0x48] sm:$0xff]
        %v482 = vld [vmem:[%s3 + $0x50] sm:$0xff]
        %v483 = vld [vmem:[%s3 + $0x58] sm:$0xff]
        %v484 = vld [vmem:[%s3 + $0x60] sm:$0xff]
        %v485 = vld [vmem:[%s3 + $0x68] sm:$0xff]
        %v486 = vld [vmem:[%s3 + $0x70] sm:$0xff]
        %v487 = vld [vmem:[%s3 + $0x78] sm:$0xff]
        %v488 = vld [vmem:[%s4] sm:$0x1]
        %v489 = vld [vmem:[%s4 + $0x1] sm:$0x1]
        %v490 = vld [vmem:[%s4 + $0x2] sm:$0x1]
        %v491 = vld [vmem:[%s4 + $0x3] sm:$0x1]
        %v496 = vperm.slane %v488, 0
        %v497 = vperm.slane %v489, 0
        %v498 = vperm.slane %v490, 0
        %v499 = vperm.slane %v491, 0
        %vm504 = vcmask 261120
        %v506 = vsel %vm504, %v470, 0
        %508 = vmatpush.msra.mxu0 0.0
        %509 = vmatpush.msra.mxu0 0.0
        %510 = vmatpush.msra.mxu0 0.0
        %511 = vmatpush.msra.mxu0 0.0
        %512 = vmatpush.msra.mxu0 0.0
        %513 = vmatpush.msra.mxu0 0.0
        %514 = vmatpush.msra.mxu0 0.0
        %515 = vmatpush.msra.mxu0 0.0
        %516 = vmatpush.msra.mxu0 0.0
        %517 = vmatpush.msra.mxu0 0.0
        %518 = vmatpush.msra.mxu0 0.0
        %519 = vmatpush.msra.mxu0 0.0
        %520 = vmatpush.msra.mxu0 %v475
        %521 = vmatpush.msra.mxu0 %v474
        %522 = vmatpush.msra.mxu0 %v473
        %523 = vmatpush.msra.mxu0 %v472
        %524 = vmatmul.f32.gmra.mxu0 %v506
        %v525 = vpop.f32.mrf.mxu0
        %v526 = vadd.f32 %v496, %v525
        %527 = vdwg.mxu0
        %528 = vmatpush.msra.mxu0 0.0
        %529 = vmatpush.msra.mxu0 0.0
        %530 = vmatpush.msra.mxu0 0.0
        %531 = vmatpush.msra.mxu0 0.0
        %532 = vmatpush.msra.mxu0 0.0
        %533 = vmatpush.msra.mxu0 0.0
        %534 = vmatpush.msra.mxu0 0.0
        %535 = vmatpush.msra.mxu0 0.0
        %536 = vmatpush.msra.mxu0 0.0
        %537 = vmatpush.msra.mxu0 0.0
        %538 = vmatpush.msra.mxu0 0.0
        %539 = vmatpush.msra.mxu0 0.0
        %540 = vmatpush.msra.mxu0 %v479
        %541 = vmatpush.msra.mxu0 %v478
        %542 = vmatpush.msra.mxu0 %v477
        %543 = vmatpush.msra.mxu0 %v476
        %544 = vmatmul.f32.gmra.mxu0 %v506
        %v545 = vpop.f32.mrf.mxu0
        %v546 = vadd.f32 %v497, %v545
        %547 = vdwg.mxu0
        %548 = vmatpush.msra.mxu0 0.0
        %549 = vmatpush.msra.mxu0 0.0
        %550 = vmatpush.msra.mxu0 0.0
        %551 = vmatpush.msra.mxu0 0.0
        %552 = vmatpush.msra.mxu0 0.0
        %553 = vmatpush.msra.mxu0 0.0
        %554 = vmatpush.msra.mxu0 0.0
        %555 = vmatpush.msra.mxu0 0.0
        %556 = vmatpush.msra.mxu0 0.0
        %557 = vmatpush.msra.mxu0 0.0
        %558 = vmatpush.msra.mxu0 0.0
        %559 = vmatpush.msra.mxu0 0.0
        %560 = vmatpush.msra.mxu0 %v483
        %561 = vmatpush.msra.mxu0 %v482
        %562 = vmatpush.msra.mxu0 %v481
        %563 = vmatpush.msra.mxu0 %v480
        %564 = vmatmul.f32.gmra.mxu0 %v506
        %v565 = vpop.f32.mrf.mxu0
        %v566 = vadd.f32 %v498, %v565
        %567 = vdwg.mxu0
        %568 = vmatpush.msra.mxu0 0.0
        %569 = vmatpush.msra.mxu0 0.0
        %570 = vmatpush.msra.mxu0 0.0
        %571 = vmatpush.msra.mxu0 0.0
        %572 = vmatpush.msra.mxu0 0.0
        %573 = vmatpush.msra.mxu0 0.0
        %574 = vmatpush.msra.mxu0 0.0
        %575 = vmatpush.msra.mxu0 0.0
        %576 = vmatpush.msra.mxu0 0.0
        %577 = vmatpush.msra.mxu0 0.0
        %578 = vmatpush.msra.mxu0 0.0
        %579 = vmatpush.msra.mxu0 0.0
        %580 = vmatpush.msra.mxu0 %v487
        %581 = vmatpush.msra.mxu0 %v486
        %582 = vmatpush.msra.mxu0 %v485
        %583 = vmatpush.msra.mxu0 %v484
        %584 = vmatmul.f32.gmra.mxu0 %v506
        %v585 = vpop.f32.mrf.mxu0
        %v586 = vadd.f32 %v499, %v585
        %587 = vdwg.mxu0
        %v588 = vld [vmem:[%s5] sm:$0xff]
        %v589 = vld [vmem:[%s5 + $0x8] sm:$0xff]
        %v590 = vld [vmem:[%s5 + $0x10] sm:$0xff]
        %v591 = vld [vmem:[%s5 + $0x18] sm:$0xff]
        %v592 = vld [vmem:[%s5 + $0x20] sm:$0xff]
        %v593 = vld [vmem:[%s5 + $0x28] sm:$0xff]
        %v594 = vld [vmem:[%s5 + $0x30] sm:$0xff]
        %v595 = vld [vmem:[%s5 + $0x38] sm:$0xff]
        %v596 = vld [vmem:[%s5 + $0x40] sm:$0xff]
        %v597 = vld [vmem:[%s5 + $0x48] sm:$0xff]
        %v598 = vld [vmem:[%s5 + $0x50] sm:$0xff]
        %v599 = vld [vmem:[%s5 + $0x58] sm:$0xff]
        %v600 = vld [vmem:[%s5 + $0x60] sm:$0xff]
        %v601 = vld [vmem:[%s5 + $0x68] sm:$0xff]
        %v602 = vld [vmem:[%s5 + $0x70] sm:$0xff]
        %v603 = vld [vmem:[%s5 + $0x78] sm:$0xff]
        %v604 = vld [vmem:[%s6] sm:$0x1]
        %v605 = vld [vmem:[%s6 + $0x1] sm:$0x1]
        %v606 = vld [vmem:[%s6 + $0x2] sm:$0x1]
        %v607 = vld [vmem:[%s6 + $0x3] sm:$0x1]
        %v612 = vperm.slane %v604, 0
        %v613 = vperm.slane %v605, 0
        %v614 = vperm.slane %v606, 0
        %v615 = vperm.slane %v607, 0
        %v621 = vsel %vm504, %v471, 0
        %623 = vmatpush.msra.mxu0 0.0
        %624 = vmatpush.msra.mxu0 0.0
        %625 = vmatpush.msra.mxu0 0.0
        %626 = vmatpush.msra.mxu0 0.0
        %627 = vmatpush.msra.mxu0 0.0
        %628 = vmatpush.msra.mxu0 0.0
        %629 = vmatpush.msra.mxu0 0.0
        %630 = vmatpush.msra.mxu0 0.0
        %631 = vmatpush.msra.mxu0 0.0
        %632 = vmatpush.msra.mxu0 0.0
        %633 = vmatpush.msra.mxu0 0.0
        %634 = vmatpush.msra.mxu0 0.0
        %635 = vmatpush.msra.mxu0 %v591
        %636 = vmatpush.msra.mxu0 %v590
        %637 = vmatpush.msra.mxu0 %v589
        %638 = vmatpush.msra.mxu0 %v588
        %639 = vmatmul.f32.gmra.mxu0 %v621
        %v640 = vpop.f32.mrf.mxu0
        %v641 = vadd.f32 %v612, %v640
        %642 = vdwg.mxu0
        %643 = vmatpush.msra.mxu0 0.0
        %644 = vmatpush.msra.mxu0 0.0
        %645 = vmatpush.msra.mxu0 0.0
        %646 = vmatpush.msra.mxu0 0.0
        %647 = vmatpush.msra.mxu0 0.0
        %648 = vmatpush.msra.mxu0 0.0
        %649 = vmatpush.msra.mxu0 0.0
        %650 = vmatpush.msra.mxu0 0.0
        %651 = vmatpush.msra.mxu0 0.0
        %652 = vmatpush.msra.mxu0 0.0
        %653 = vmatpush.msra.mxu0 0.0
        %654 = vmatpush.msra.mxu0 0.0
        %655 = vmatpush.msra.mxu0 %v595
        %656 = vmatpush.msra.mxu0 %v594
        %657 = vmatpush.msra.mxu0 %v593
        %658 = vmatpush.msra.mxu0 %v592
        %659 = vmatmul.f32.gmra.mxu0 %v621
        %v660 = vpop.f32.mrf.mxu0
        %v661 = vadd.f32 %v613, %v660
        %662 = vdwg.mxu0
        %663 = vmatpush.msra.mxu0 0.0
        %664 = vmatpush.msra.mxu0 0.0
        %665 = vmatpush.msra.mxu0 0.0
        %666 = vmatpush.msra.mxu0 0.0
        %667 = vmatpush.msra.mxu0 0.0
        %668 = vmatpush.msra.mxu0 0.0
        %669 = vmatpush.msra.mxu0 0.0
        %670 = vmatpush.msra.mxu0 0.0
        %671 = vmatpush.msra.mxu0 0.0
        %672 = vmatpush.msra.mxu0 0.0
        %673 = vmatpush.msra.mxu0 0.0
        %674 = vmatpush.msra.mxu0 0.0
        %675 = vmatpush.msra.mxu0 %v599
        %676 = vmatpush.msra.mxu0 %v598
        %677 = vmatpush.msra.mxu0 %v597
        %678 = vmatpush.msra.mxu0 %v596
        %679 = vmatmul.f32.gmra.mxu0 %v621
        %v680 = vpop.f32.mrf.mxu0
        %v681 = vadd.f32 %v614, %v680
        %682 = vdwg.mxu0
        %683 = vmatpush.msra.mxu0 0.0
        %684 = vmatpush.msra.mxu0 0.0
        %685 = vmatpush.msra.mxu0 0.0
        %686 = vmatpush.msra.mxu0 0.0
        %687 = vmatpush.msra.mxu0 0.0
        %688 = vmatpush.msra.mxu0 0.0
        %689 = vmatpush.msra.mxu0 0.0
        %690 = vmatpush.msra.mxu0 0.0
        %691 = vmatpush.msra.mxu0 0.0
        %692 = vmatpush.msra.mxu0 0.0
        %693 = vmatpush.msra.mxu0 0.0
        %694 = vmatpush.msra.mxu0 0.0
        %695 = vmatpush.msra.mxu0 %v603
        %696 = vmatpush.msra.mxu0 %v602
        %697 = vmatpush.msra.mxu0 %v601
        %698 = vmatpush.msra.mxu0 %v600
        %699 = vmatmul.f32.gmra.mxu0 %v621
        %v700 = vpop.f32.mrf.mxu0
        %v701 = vadd.f32 %v615, %v700
        %702 = vdwg.mxu0
        %v703 = vld [vmem:[%s7] sm:$0xff]
        %v704 = vld [vmem:[%s7 + $0x8] sm:$0xff]
        %v705 = vld [vmem:[%s7 + $0x10] sm:$0xff]
        %v706 = vld [vmem:[%s7 + $0x18] sm:$0xff]
        %v707 = vld [vmem:[%s7 + $0x20] sm:$0xff]
        %v708 = vld [vmem:[%s7 + $0x28] sm:$0xff]
        %v709 = vld [vmem:[%s7 + $0x30] sm:$0xff]
        %v710 = vld [vmem:[%s7 + $0x38] sm:$0xff]
        %v711 = vld [vmem:[%s7 + $0x40] sm:$0xff]
        %v712 = vld [vmem:[%s7 + $0x48] sm:$0xff]
        %v713 = vld [vmem:[%s7 + $0x50] sm:$0xff]
        %v714 = vld [vmem:[%s7 + $0x58] sm:$0xff]
        %v715 = vld [vmem:[%s7 + $0x60] sm:$0xff]
        %v716 = vld [vmem:[%s7 + $0x68] sm:$0xff]
        %v717 = vld [vmem:[%s7 + $0x70] sm:$0xff]
        %v718 = vld [vmem:[%s7 + $0x78] sm:$0xff]
        %v719 = vld [vmem:[%s8] sm:$0x1]
        %v720 = vld [vmem:[%s8 + $0x1] sm:$0x1]
        %v721 = vld [vmem:[%s8 + $0x2] sm:$0x1]
        %v722 = vld [vmem:[%s8 + $0x3] sm:$0x1]
        %v727 = vperm.slane %v719, 0
        %v728 = vperm.slane %v720, 0
        %v729 = vperm.slane %v721, 0
        %v730 = vperm.slane %v722, 0
        %735 = vmatpush.msra.mxu0 0.0
        %736 = vmatpush.msra.mxu0 0.0
        %737 = vmatpush.msra.mxu0 0.0
        %738 = vmatpush.msra.mxu0 0.0
        %739 = vmatpush.msra.mxu0 0.0
        %740 = vmatpush.msra.mxu0 0.0
        %741 = vmatpush.msra.mxu0 0.0
        %742 = vmatpush.msra.mxu0 0.0
        %743 = vmatpush.msra.mxu0 0.0
        %744 = vmatpush.msra.mxu0 0.0
        %745 = vmatpush.msra.mxu0 0.0
        %746 = vmatpush.msra.mxu0 0.0
        %747 = vmatpush.msra.mxu0 %v706
        %748 = vmatpush.msra.mxu0 %v705
        %749 = vmatpush.msra.mxu0 %v704
        %750 = vmatpush.msra.mxu0 %v703
        %751 = vmatmul.f32.gmra.mxu0 %v621
        %v752 = vpop.f32.mrf.mxu0
        %v753 = vadd.f32 %v727, %v752
        %754 = vdwg.mxu0
        %755 = vmatpush.msra.mxu0 0.0
        %756 = vmatpush.msra.mxu0 0.0
        %757 = vmatpush.msra.mxu0 0.0
        %758 = vmatpush.msra.mxu0 0.0
        %759 = vmatpush.msra.mxu0 0.0
        %760 = vmatpush.msra.mxu0 0.0
        %761 = vmatpush.msra.mxu0 0.0
        %762 = vmatpush.msra.mxu0 0.0
        %763 = vmatpush.msra.mxu0 0.0
        %764 = vmatpush.msra.mxu0 0.0
        %765 = vmatpush.msra.mxu0 0.0
        %766 = vmatpush.msra.mxu0 0.0
        %767 = vmatpush.msra.mxu0 %v710
        %768 = vmatpush.msra.mxu0 %v709
        %769 = vmatpush.msra.mxu0 %v708
        %770 = vmatpush.msra.mxu0 %v707
        %771 = vmatmul.f32.gmra.mxu0 %v621
        %v772 = vpop.f32.mrf.mxu0
        %v773 = vadd.f32 %v728, %v772
        %774 = vdwg.mxu0
        %775 = vmatpush.msra.mxu0 0.0
        %776 = vmatpush.msra.mxu0 0.0
        %777 = vmatpush.msra.mxu0 0.0
        %778 = vmatpush.msra.mxu0 0.0
        %779 = vmatpush.msra.mxu0 0.0
        %780 = vmatpush.msra.mxu0 0.0
        %781 = vmatpush.msra.mxu0 0.0
        %782 = vmatpush.msra.mxu0 0.0
        %783 = vmatpush.msra.mxu0 0.0
        %784 = vmatpush.msra.mxu0 0.0
        %785 = vmatpush.msra.mxu0 0.0
        %786 = vmatpush.msra.mxu0 0.0
        %787 = vmatpush.msra.mxu0 %v714
        %788 = vmatpush.msra.mxu0 %v713
        %789 = vmatpush.msra.mxu0 %v712
        %790 = vmatpush.msra.mxu0 %v711
        %791 = vmatmul.f32.gmra.mxu0 %v621
        %v792 = vpop.f32.mrf.mxu0
        %v793 = vadd.f32 %v729, %v792
        %794 = vdwg.mxu0
        %795 = vmatpush.msra.mxu0 0.0
        %796 = vmatpush.msra.mxu0 0.0
        %797 = vmatpush.msra.mxu0 0.0
        %798 = vmatpush.msra.mxu0 0.0
        %799 = vmatpush.msra.mxu0 0.0
        %800 = vmatpush.msra.mxu0 0.0
        %801 = vmatpush.msra.mxu0 0.0
        %802 = vmatpush.msra.mxu0 0.0
        %803 = vmatpush.msra.mxu0 0.0
        %804 = vmatpush.msra.mxu0 0.0
        %805 = vmatpush.msra.mxu0 0.0
        %806 = vmatpush.msra.mxu0 0.0
        %807 = vmatpush.msra.mxu0 %v718
        %808 = vmatpush.msra.mxu0 %v717
        %809 = vmatpush.msra.mxu0 %v716
        %810 = vmatpush.msra.mxu0 %v715
        %811 = vmatmul.f32.gmra.mxu0 %v621
        %v812 = vpop.f32.mrf.mxu0
        %v813 = vadd.f32 %v730, %v812
        %814 = vdwg.mxu0
        %vm815 = vcmask 64512
        %v817 = vsel %vm815, %v526, 0
        %v820 = vsel %vm815, %v641, 0
        %822 = vmatpush.xpose.msra.mxu0 0.0
        %823 = vmatpush.xpose.msra.mxu0 0.0
        %824 = vmatpush.xpose.msra.mxu0 0.0
        %825 = vmatpush.xpose.msra.mxu0 0.0
        %826 = vmatpush.xpose.msra.mxu0 0.0
        %827 = vmatpush.xpose.msra.mxu0 0.0
        %828 = vmatpush.xpose.msra.mxu0 0.0
        %829 = vmatpush.xpose.msra.mxu0 0.0
        %830 = vmatpush.xpose.msra.mxu0 0.0
        %831 = vmatpush.xpose.msra.mxu0 0.0
        %832 = vmatpush.xpose.msra.mxu0 0.0
        %833 = vmatpush.xpose.msra.mxu0 0.0
        %834 = vmatpush.xpose.msra.mxu0 0.0
        %835 = vmatpush.xpose.msra.mxu0 0.0
        %836 = vmatpush.xpose.msra.mxu0 0.0
        %837 = vmatpush.xpose.msra.mxu0 %v820
        %838 = vmatmul.f32.gmra.mxu0 %v817
        %v839 = vpop.f32.mrf.mxu0
        %v840 = vadd.f32 0.0, %v839
        %841 = vdwg.mxu0
        %v843 = vsel %vm815, %v546, 0
        %v846 = vsel %vm815, %v661, 0
        %848 = vmatpush.xpose.msra.mxu0 0.0
        %849 = vmatpush.xpose.msra.mxu0 0.0
        %850 = vmatpush.xpose.msra.mxu0 0.0
        %851 = vmatpush.xpose.msra.mxu0 0.0
        %852 = vmatpush.xpose.msra.mxu0 0.0
        %853 = vmatpush.xpose.msra.mxu0 0.0
        %854 = vmatpush.xpose.msra.mxu0 0.0
        %855 = vmatpush.xpose.msra.mxu0 0.0
        %856 = vmatpush.xpose.msra.mxu0 0.0
        %857 = vmatpush.xpose.msra.mxu0 0.0
        %858 = vmatpush.xpose.msra.mxu0 0.0
        %859 = vmatpush.xpose.msra.mxu0 0.0
        %860 = vmatpush.xpose.msra.mxu0 0.0
        %861 = vmatpush.xpose.msra.mxu0 0.0
        %862 = vmatpush.xpose.msra.mxu0 0.0
        %863 = vmatpush.xpose.msra.mxu0 %v846
        %864 = vmatmul.f32.gmra.mxu0 %v843
        %v865 = vpop.f32.mrf.mxu0
        %v866 = vadd.f32 0.0, %v865
        %867 = vdwg.mxu0
        %v869 = vsel %vm815, %v566, 0
        %v872 = vsel %vm815, %v681, 0
        %874 = vmatpush.xpose.msra.mxu0 0.0
        %875 = vmatpush.xpose.msra.mxu0 0.0
        %876 = vmatpush.xpose.msra.mxu0 0.0
        %877 = vmatpush.xpose.msra.mxu0 0.0
        %878 = vmatpush.xpose.msra.mxu0 0.0
        %879 = vmatpush.xpose.msra.mxu0 0.0
        %880 = vmatpush.xpose.msra.mxu0 0.0
        %881 = vmatpush.xpose.msra.mxu0 0.0
        %882 = vmatpush.xpose.msra.mxu0 0.0
        %883 = vmatpush.xpose.msra.mxu0 0.0
        %884 = vmatpush.xpose.msra.mxu0 0.0
        %885 = vmatpush.xpose.msra.mxu0 0.0
        %886 = vmatpush.xpose.msra.mxu0 0.0
        %887 = vmatpush.xpose.msra.mxu0 0.0
        %888 = vmatpush.xpose.msra.mxu0 0.0
        %889 = vmatpush.xpose.msra.mxu0 %v872
        %890 = vmatmul.f32.gmra.mxu0 %v869
        %v891 = vpop.f32.mrf.mxu0
        %v892 = vadd.f32 0.0, %v891
        %893 = vdwg.mxu0
        %v895 = vsel %vm815, %v586, 0
        %v898 = vsel %vm815, %v701, 0
        %900 = vmatpush.xpose.msra.mxu0 0.0
        %901 = vmatpush.xpose.msra.mxu0 0.0
        %902 = vmatpush.xpose.msra.mxu0 0.0
        %903 = vmatpush.xpose.msra.mxu0 0.0
        %904 = vmatpush.xpose.msra.mxu0 0.0
        %905 = vmatpush.xpose.msra.mxu0 0.0
        %906 = vmatpush.xpose.msra.mxu0 0.0
        %907 = vmatpush.xpose.msra.mxu0 0.0
        %908 = vmatpush.xpose.msra.mxu0 0.0
        %909 = vmatpush.xpose.msra.mxu0 0.0
        %910 = vmatpush.xpose.msra.mxu0 0.0
        %911 = vmatpush.xpose.msra.mxu0 0.0
        %912 = vmatpush.xpose.msra.mxu0 0.0
        %913 = vmatpush.xpose.msra.mxu0 0.0
        %914 = vmatpush.xpose.msra.mxu0 0.0
        %915 = vmatpush.xpose.msra.mxu0 %v898
        %916 = vmatmul.f32.gmra.mxu0 %v895
        %v917 = vpop.f32.mrf.mxu0
        %v918 = vadd.f32 0.0, %v917
        %919 = vdwg.mxu0
        %v920 = vmul.f32 %v840, 0.35355338
        %v921 = vmul.f32 %v866, 0.35355338
        %v922 = vmul.f32 %v892, 0.35355338
        %v923 = vmul.f32 %v918, 0.35355338
        %v924 = vld [vmem:[%s469] sm:$0xff]
        %vm925 = vcmp.eq.f32.partialorder %v924, 0.0
        %v926 = vsel %vm925, 1, 0
        %vm927 = vcmp.eq.s32.totalorder %v926, 1
        %v928 = vsel %vm927, -1e+10, %v920
        %v929 = vsel %vm927, -1e+10, %v921
        %v930 = vsel %vm927, -1e+10, %v922
        %v931 = vsel %vm927, -1e+10, %v923
        %v932 = vsel %vm815, %v928, -inf
        %933 = vmax.xlane.f32.xlu0 %v932
        %v934 = vpop.xlane.xlu0 %933
        %v935 = vsel %vm815, %v929, -inf
        %936 = vmax.xlane.f32.xlu0 %v935
        %v937 = vpop.xlane.xlu0 %936
        %v938 = vsel %vm815, %v930, -inf
        %939 = vmax.xlane.f32.xlu0 %v938
        %v940 = vpop.xlane.xlu0 %939
        %v941 = vsel %vm815, %v931, -inf
        %942 = vmax.xlane.f32.xlu0 %v941
        %v943 = vpop.xlane.xlu0 %942
        %v944 = vsub.f32 %v928, %v934
        %v945 = vsub.f32 %v929, %v937
        %v946 = vsub.f32 %v930, %v940
        %v947 = vsub.f32 %v931, %v943
        %v948 = vmul.f32 %v944, 1.442695
        %v949 = vpow.pop %v948
        %v950 = vmul.f32 %v945, 1.442695
        %v951 = vpow.pop %v950
        %v952 = vmul.f32 %v946, 1.442695
        %v953 = vpow.pop %v952
        %v954 = vmul.f32 %v947, 1.442695
        %v955 = vpow.pop %v954
        %v956 = vsel %vm815, %v949, 0.0
        %957 = vadd.xlane.f32.xlu0 %v956
        %v958 = vpop.xlane.xlu0 %957
        %v959 = vsel %vm815, %v951, 0.0
        %960 = vadd.xlane.f32.xlu0 %v959
        %v961 = vpop.xlane.xlu0 %960
        %v962 = vsel %vm815, %v953, 0.0
        %963 = vadd.xlane.f32.xlu0 %v962
        %v964 = vpop.xlane.xlu0 %963
        %v965 = vsel %vm815, %v955, 0.0
        %966 = vadd.xlane.f32.xlu0 %v965
        %v967 = vpop.xlane.xlu0 %966
        %v968 = vrcp.pop %v958
        %v969 = vrcp.pop %v961
        %v970 = vrcp.pop %v964
        %v971 = vrcp.pop %v967
        %v972 = vmul.f32 %v949, %v968
        %v973 = vmul.f32 %v951, %v969
        %v974 = vmul.f32 %v953, %v970
        %v975 = vmul.f32 %v955, %v971
        %v977 = vsel %vm815, %v972, 0
        %979 = vmatpush.msra.mxu0 0.0
        %980 = vmatpush.msra.mxu0 0.0
        %981 = vmatpush.msra.mxu0 0.0
        %982 = vmatpush.msra.mxu0 0.0
        %983 = vmatpush.msra.mxu0 0.0
        %984 = vmatpush.msra.mxu0 0.0
        %985 = vmatpush.msra.mxu0 0.0
        %986 = vmatpush.msra.mxu0 0.0
        %987 = vmatpush.msra.mxu0 0.0
        %988 = vmatpush.msra.mxu0 0.0
        %989 = vmatpush.msra.mxu0 0.0
        %990 = vmatpush.msra.mxu0 0.0
        %991 = vmatpush.msra.mxu0 0.0
        %992 = vmatpush.msra.mxu0 0.0
        %993 = vmatpush.msra.mxu0 0.0
        %994 = vmatpush.msra.mxu0 %v753
        %995 = vmatmul.f32.gmra.mxu0 %v977
        %v996 = vpop.f32.mrf.mxu0
        %v997 = vadd.f32 0.0, %v996
        %998 = vdwg.mxu0
        %v1000 = vsel %vm815, %v973, 0
        %1002 = vmatpush.msra.mxu0 0.0
        %1003 = vmatpush.msra.mxu0 0.0
        %1004 = vmatpush.msra.mxu0 0.0
        %1005 = vmatpush.msra.mxu0 0.0
        %1006 = vmatpush.msra.mxu0 0.0
        %1007 = vmatpush.msra.mxu0 0.0
        %1008 = vmatpush.msra.mxu0 0.0
        %1009 = vmatpush.msra.mxu0 0.0
        %1010 = vmatpush.msra.mxu0 0.0
        %1011 = vmatpush.msra.mxu0 0.0
        %1012 = vmatpush.msra.mxu0 0.0
        %1013 = vmatpush.msra.mxu0 0.0
        %1014 = vmatpush.msra.mxu0 0.0
        %1015 = vmatpush.msra.mxu0 0.0
        %1016 = vmatpush.msra.mxu0 0.0
        %1017 = vmatpush.msra.mxu0 %v773
        %1018 = vmatmul.f32.gmra.mxu0 %v1000
        %v1019 = vpop.f32.mrf.mxu0
        %v1020 = vadd.f32 0.0, %v1019
        %1021 = vdwg.mxu0
        %v1023 = vsel %vm815, %v974, 0
        %1025 = vmatpush.msra.mxu0 0.0
        %1026 = vmatpush.msra.mxu0 0.0
        %1027 = vmatpush.msra.mxu0 0.0
        %1028 = vmatpush.msra.mxu0 0.0
        %1029 = vmatpush.msra.mxu0 0.0
        %1030 = vmatpush.msra.mxu0 0.0
        %1031 = vmatpush.msra.mxu0 0.0
        %1032 = vmatpush.msra.mxu0 0.0
        %1033 = vmatpush.msra.mxu0 0.0
        %1034 = vmatpush.msra.mxu0 0.0
        %1035 = vmatpush.msra.mxu0 0.0
        %1036 = vmatpush.msra.mxu0 0.0
        %1037 = vmatpush.msra.mxu0 0.0
        %1038 = vmatpush.msra.mxu0 0.0
        %1039 = vmatpush.msra.mxu0 0.0
        %1040 = vmatpush.msra.mxu0 %v793
        %1041 = vmatmul.f32.gmra.mxu0 %v1023
        %v1042 = vpop.f32.mrf.mxu0
        %v1043 = vadd.f32 0.0, %v1042
        %1044 = vdwg.mxu0
        %v1046 = vsel %vm815, %v975, 0
        %1048 = vmatpush.msra.mxu0 0.0
        %1049 = vmatpush.msra.mxu0 0.0
        %1050 = vmatpush.msra.mxu0 0.0
        %1051 = vmatpush.msra.mxu0 0.0
        %1052 = vmatpush.msra.mxu0 0.0
        %1053 = vmatpush.msra.mxu0 0.0
        %1054 = vmatpush.msra.mxu0 0.0
        %1055 = vmatpush.msra.mxu0 0.0
        %1056 = vmatpush.msra.mxu0 0.0
        %1057 = vmatpush.msra.mxu0 0.0
        %1058 = vmatpush.msra.mxu0 0.0
        %1059 = vmatpush.msra.mxu0 0.0
        %1060 = vmatpush.msra.mxu0 0.0
        %1061 = vmatpush.msra.mxu0 0.0
        %1062 = vmatpush.msra.mxu0 0.0
        %1063 = vmatpush.msra.mxu0 %v813
        %1064 = vmatmul.f32.gmra.mxu0 %v1046
        %v1065 = vpop.f32.mrf.mxu0
        %v1066 = vadd.f32 0.0, %v1065
        %1067 = vdwg.mxu0
        %v1068 = vld [vmem:[%s9] sm:$0xff]
        %v1069 = vld [vmem:[%s9 + $0x8] sm:$0xff]
        %v1070 = vld [vmem:[%s9 + $0x10] sm:$0xff]
        %v1071 = vld [vmem:[%s9 + $0x18] sm:$0xff]
        %v1073 = vsel %vm815, %v997, 0
        %1075 = vmatpush.msra.mxu0 0.0
        %1076 = vmatpush.msra.mxu0 0.0
        %1077 = vmatpush.msra.mxu0 0.0
        %1078 = vmatpush.msra.mxu0 0.0
        %1079 = vmatpush.msra.mxu0 0.0
        %1080 = vmatpush.msra.mxu0 0.0
        %1081 = vmatpush.msra.mxu0 0.0
        %1082 = vmatpush.msra.mxu0 0.0
        %1083 = vmatpush.msra.mxu0 0.0
        %1084 = vmatpush.msra.mxu0 0.0
        %1085 = vmatpush.msra.mxu0 0.0
        %1086 = vmatpush.msra.mxu0 0.0
        %1087 = vmatpush.msra.mxu0 0.0
        %1088 = vmatpush.msra.mxu0 0.0
        %1089 = vmatpush.msra.mxu0 0.0
        %1090 = vmatpush.msra.mxu0 %v1068
        %1091 = vmatmul.f32.gmra.mxu0 %v1073
        %v1092 = vpop.f32.mrf.mxu0
        %v1093 = vadd.f32 0.0, %v1092
        %1094 = vdwg.mxu0
        %v1096 = vsel %vm815, %v1020, 0
        %1098 = vmatpush.msra.mxu0 0.0
        %1099 = vmatpush.msra.mxu0 0.0
        %1100 = vmatpush.msra.mxu0 0.0
        %1101 = vmatpush.msra.mxu0 0.0
        %1102 = vmatpush.msra.mxu0 0.0
        %1103 = vmatpush.msra.mxu0 0.0
        %1104 = vmatpush.msra.mxu0 0.0
        %1105 = vmatpush.msra.mxu0 0.0
        %1106 = vmatpush.msra.mxu0 0.0
        %1107 = vmatpush.msra.mxu0 0.0
        %1108 = vmatpush.msra.mxu0 0.0
        %1109 = vmatpush.msra.mxu0 0.0
        %1110 = vmatpush.msra.mxu0 0.0
        %1111 = vmatpush.msra.mxu0 0.0
        %1112 = vmatpush.msra.mxu0 0.0
        %1113 = vmatpush.msra.mxu0 %v1069
        %1114 = vmatmul.f32.gmra.mxu0 %v1096
        %v1115 = vpop.f32.mrf.mxu0
        %v1116 = vadd.f32 0.0, %v1115
        %1117 = vdwg.mxu0
        %v1119 = vsel %vm815, %v1043, 0
        %1121 = vmatpush.msra.mxu0 0.0
        %1122 = vmatpush.msra.mxu0 0.0
        %1123 = vmatpush.msra.mxu0 0.0
        %1124 = vmatpush.msra.mxu0 0.0
        %1125 = vmatpush.msra.mxu0 0.0
        %1126 = vmatpush.msra.mxu0 0.0
        %1127 = vmatpush.msra.mxu0 0.0
        %1128 = vmatpush.msra.mxu0 0.0
        %1129 = vmatpush.msra.mxu0 0.0
        %1130 = vmatpush.msra.mxu0 0.0
        %1131 = vmatpush.msra.mxu0 0.0
        %1132 = vmatpush.msra.mxu0 0.0
        %1133 = vmatpush.msra.mxu0 0.0
        %1134 = vmatpush.msra.mxu0 0.0
        %1135 = vmatpush.msra.mxu0 0.0
        %1136 = vmatpush.msra.mxu0 %v1070
        %1137 = vmatmul.f32.gmra.mxu0 %v1119
        %v1138 = vpop.f32.mrf.mxu0
        %v1139 = vadd.f32 0.0, %v1138
        %1140 = vdwg.mxu0
        %v1142 = vsel %vm815, %v1066, 0
        %1144 = vmatpush.msra.mxu0 0.0
        %1145 = vmatpush.msra.mxu0 0.0
        %1146 = vmatpush.msra.mxu0 0.0
        %1147 = vmatpush.msra.mxu0 0.0
        %1148 = vmatpush.msra.mxu0 0.0
        %1149 = vmatpush.msra.mxu0 0.0
        %1150 = vmatpush.msra.mxu0 0.0
        %1151 = vmatpush.msra.mxu0 0.0
        %1152 = vmatpush.msra.mxu0 0.0
        %1153 = vmatpush.msra.mxu0 0.0
        %1154 = vmatpush.msra.mxu0 0.0
        %1155 = vmatpush.msra.mxu0 0.0
        %1156 = vmatpush.msra.mxu0 0.0
        %1157 = vmatpush.msra.mxu0 0.0
        %1158 = vmatpush.msra.mxu0 0.0
        %1159 = vmatpush.msra.mxu0 %v1071
        %1160 = vmatmul.f32.gmra.mxu0 %v1142
        %v1161 = vpop.f32.mrf.mxu0
        %v1162 = vadd.f32 0.0, %v1161
        %1163 = vdwg.mxu0
        %v1164 = vsel %vm504, %v1093, 0.0
        %v1165 = vsel %vm504, %v1116, 0.0
        %v1166 = vadd.f32 %v1164, %v1165
        %v1167 = vsel %vm504, %v1139, 0.0
        %v1168 = vadd.f32 %v1166, %v1167
        %v1169 = vsel %vm504, %v1162, 0.0
        %v1170 = vadd.f32 %v1168, %v1169
        %v1171 = vadd.f32 %v470, %v1170
        %v1172 = vld [vmem:[%s10] sm:$0x1]
        %v1174 = vperm.slane %v1172, 0
        %v1176 = vadd.f32 %v1171, %v1174
        %v1177 = vsel %vm504, %v1176, 0.0
        %1178 = vadd.xlane.f32.xlu0 %v1177
        %v1179 = vpop.xlane.xlu0 %1178
        %v1180 = vrcp.pop 32.0
        %v1181 = vmul.f32 32.0, %v1180
        %v1182 = vsub.f32 1.0, %v1181
        %v1183 = vmul.f32 %v1180, %v1182
        %v1184 = vadd.f32 %v1180, %v1183
        %vm1185 = vweird.f32 %v1180
        %v1186 = vsel %vm1185, %v1180, %v1184
        %v1187 = vmul.f32 %v1179, %v1186
        %v1188 = vsub.f32 %v1176, %v1187
        %v1189 = vmul.f32 %v1188, %v1188
        %v1190 = vsel %vm504, %v1189, 0.0
        %1191 = vadd.xlane.f32.xlu0 %v1190
        %v1192 = vpop.xlane.xlu0 %1191
        %v1193 = vmul.f32 %v1192, %v1186
        %v1194 = vadd.f32 %v1193, 1e-05
        %v1195 = vrsqrt.pop %v1194
        %v1196 = vmul.f32 %v1195, %v1194
        %v1197 = vmul.f32 %v1196, %v1195
        %v1198 = vmul.f32 0.5, %v1197
        %v1199 = vsub.f32 1.5, %v1198
        %v1200 = vmul.f32 %v1195, %v1199
        %vm1201 = vweird.f32 %v1194
        %vm1202 = vweird.f32 %v1195
        %vm1203 = vmor %vm1201, %vm1202
        %v1204 = vsel %vm1203, %v1195, %v1200
        %v1205 = vmul.f32 %v1188, %v1204
        %v1206 = vld [vmem:[%s11] sm:$0x1]
        %v1208 = vperm.slane %v1206, 0
        %v1210 = vmul.f32 %v1205, %v1208
        %v1211 = vld [vmem:[%s12] sm:$0x1]
        %v1213 = vperm.slane %v1211, 0
        %v1215 = vadd.f32 %v1210, %v1213
        %1216 = vst.msk [vmem:[%s457] sm:$0xff] %vm504, %v1215
        %s1217 = sand.u32 %s323, 1
        %s1218 = scalar_lea.sflag [#allocation3], %s1217
        %s1219 = sand.u32 %s323, 1
        %s1220 = smul.addr %s1219, 8
        %s1221 = scalar_lea.vmem [#allocation2], %s1220
        // Predicated region
        $region73: #{tpu_custom_call.1} parent=71 // pred_check
          %p1222 = pneg %p333
        $region74: #{tpu_custom_call.1} parent=71 // pred_check_branch
          %1224 = sbr.rel (%p1222) target = $region76
        $region75: #{tpu_custom_call.1} parent=71 // pred_region
          %1226 = vsyncadd %s1218, 0
          %s1227 = smul.addr %s27, 8
          %s1228 = scalar_lea.hbm %s13, %s1227
          %s1230 = sshll.u32 %s1221, 4
          %s1231 = int_to_ptr.vmem [resolvable:$true] %s1230
          %s1232 = sshll.u32 %s1228, 4
          %s1233 = int_to_ptr.hbm [resolvable:$true] %s1232
          %1235 = dma.vmem_to_hbm [thread:$0]  %s1231, 128, %s1233, %s1218
        $region76: #{tpu_custom_call.1} parent=71 // pred_fallthru
          _
      $region72: #{tpu_custom_call.1} parent=5 // pred_fallthru
        _
      %p1236 = scmp.le.s32.totalorder 2, %s22
      // Predicated region
      $region77: #{tpu_custom_call.1} parent=5 // pred_check
        %p1237 = pneg %p1236
      $region78: #{tpu_custom_call.1} parent=5 // pred_check_branch
        %1239 = sbr.rel (%p1237) target = $region80
      $region79: #{tpu_custom_call.1} parent=5 // pred_region
        %s1240 = ssub.s32 %s22, 2
        // Predicated region
        $region81: #{tpu_custom_call.1} parent=79 // pred_check
          %p1241 = pneg %p339
        $region82: #{tpu_custom_call.1} parent=79 // pred_check_branch
          %1243 = sbr.rel (%p1241) target = $region84
        $region83: #{tpu_custom_call.1} parent=79 // pred_region
          %s1244 = sand.u32 %s324, 1
          %s1245 = scalar_lea.sflag [#allocation3], %s1244
          %s1246 = sand.u32 %s324, 1
          %s1247 = smul.addr %s1246, 8
          %s1248 = scalar_lea.vmem [#allocation2], %s1247
          %1250 = dma.done %s1245, 128
        $region84: #{tpu_custom_call.1} parent=79 // pred_fallthru
          _
      $region80: #{tpu_custom_call.1} parent=5 // pred_fallthru
        _
    $region6: #{tpu_custom_call.1} parent=1 // loop_footer
      %s26 = sadd.s32 1, %s22
    $region7: #{tpu_custom_call.1} parent=1 // loop_footer_branch
      %21 = sbr.rel target = $region3
    $region8: #{tpu_custom_call.1} parent=1 // loop_exit
      _
    %1251 = vsyncpa [#allocation3], 1
    %s1252 = scalar_lea.sflag [#allocation3], 1
    %1253 = vsyncpa %s1252, 1

</llo_original>
